<compile_context>
chip_gen: v7x
topology: tpu7x:2x2x1
jax: 0.10.0
libtpu: 0.0.40
codegen_flags: <defaults>
</compile_context>

<pallas_src>
import functools

import jax
import jax.numpy as jnp
from jax import lax
from jax.experimental import pallas as pl
from jax.experimental.pallas import tpu as pltpu


NEG_BIG = -1e30  # f32-safe additive mask fill (exp(-1e30 - m) == 0)


# ----------------------------------------------------------------------------
# Fused kernel: all transformer layers + final norm + mean pool + reward head.
# Grid = (depth,);  activation carried in VMEM scratch across layer steps.
# ----------------------------------------------------------------------------
def _fused_palm_kernel(x_ref, gamma_ref, wfused_ref, wout_ref, cossin_ref,
                       mask_ref, pool_ref, fgamma_ref, wpred_ref,
                       o_ref, x_carry,
                       *, heads, dim_head, ff_inner, batch, seq):
    bn = batch * seq
    hd = heads * dim_head
    half = dim_head // 2
    l = pl.program_id(0)

    # load embeddings for ALL batch elements at the first layer step
    @pl.when(l == 0)
    def _():
        x_carry[...] = x_ref[...]

    x = x_carry[...]                                          # (bn, D) f32

    # ---- LayerNorm (gamma learnable, beta == 0, eps = 1e-5), f32 ----
    mu = jnp.mean(x, axis=-1, keepdims=True)
    var = jnp.mean((x - mu) ** 2, axis=-1, keepdims=True)
    ln = (x - mu) * lax.rsqrt(var + 1e-5) * gamma_ref[0]      # (bn, D)

    # ---- fused QKV/FF projection (bf16 inputs, f32 accumulation) ----
    # q-scale is already folded into the Q columns of w_fused at prep time.
    fused = jnp.dot(ln.astype(jnp.bfloat16), wfused_ref[0],
                    preferred_element_type=jnp.float32)       # (bn, F)

    q_all = fused[:, :hd]                                     # (bn, h*d)
    k = fused[:, hd:hd + dim_head]                            # (bn, d) multi-query
    v = fused[:, hd + dim_head:hd + 2 * dim_head]             # (bn, d)
    ff = fused[:, hd + 2 * dim_head:]                         # (bn, 2*ff_inner)

    # ---- rotary embedding: all Q heads + K in one vectorized pass ----
    # cos / sign-folded sin are precomputed in the wrapper already tiled for
    # the sublane-stacked [q_h0 .. q_h{H-1} | k] layout below.
    # TODO(synk): with larger `heads` a reshape/einshape head-stacking path
    # would reduce the slice+concat relayout; kept explicit here for robust
    # Mosaic lowering at these small shapes.
    qk = jnp.concatenate(
        [q_all[:, h * dim_head:(h + 1) * dim_head] for h in range(heads)] + [k],
        axis=0)                                               # ((H+1)*bn, d)
    cos = cossin_ref[:, :dim_head]                            # ((H+1)*bn, d)
    sin_signed = cossin_ref[:, dim_head:]                     # sign already folded
    qk_rot = qk * cos + jnp.concatenate(
        [qk[:, half:], qk[:, :half]], axis=-1) * sin_signed
    q_rot = qk_rot[:heads * bn]                               # (H*bn, d)
    k_rot = qk_rot[heads * bn:]                               # (bn, d)

    # ---- attention: all heads AND all batch elements in one MXU call ----
    sim = lax.dot_general(
        q_rot.astype(jnp.bfloat16), k_rot.astype(jnp.bfloat16),
        (((1,), (1,)), ((), ())),                             # contract d, no .T
        preferred_element_type=jnp.float32)                   # (H*bn, bn)

    sim = sim + mask_ref[...]       # precomputed causal + cross-batch bias
    m = jnp.max(sim, axis=-1, keepdims=True)
    e = jnp.exp(sim - m)
    denom = jnp.sum(e, axis=-1, keepdims=True)
    attn = e * pl.reciprocal(denom, approx=True)              # softmax

    out_all = jnp.dot(attn.astype(jnp.bfloat16), v.astype(jnp.bfloat16),
                      preferred_element_type=jnp.float32)     # (H*bn, d)
    out = jnp.concatenate(
        [out_all[h * bn:(h + 1) * bn] for h in range(heads)],
        axis=-1)                                              # (bn, h*d)

    # ---- SwiGLU feed-forward (elementwise in f32) ----
    x_ff = ff[:, :ff_inner]
    gate = ff[:, ff_inner:]
    swi = x_ff * gate * jax.nn.sigmoid(gate)                  # (bn, ff_inner)

    # ---- merged attn_out + ff_out projection (single MXU call) ----
    merged = jnp.concatenate([out, swi], axis=-1).astype(jnp.bfloat16)
    proj = jnp.dot(merged, wout_ref[0],
                   preferred_element_type=jnp.float32)        # (bn, D)

    # block output + residual (Residual module)
    y = proj + x
    x_carry[...] = y

    # ---- final LayerNorm + mean pool + reward head (last layer only) ----
    @pl.when(l == pl.num_programs(0) - 1)
    def _():
        mu2 = jnp.mean(y, axis=-1, keepdims=True)
        var2 = jnp.mean((y - mu2) ** 2, axis=-1, keepdims=True)
        ln2 = (y - mu2) * lax.rsqrt(var2 + 1e-5) * fgamma_ref[...]
        # TODO(synk): unmasked mean over seq matches the labels=None / no-pad
        # path of RewardModel; a masked pool matrix would be needed for
        # padded/variable-length input.
        pooled = jnp.dot(pool_ref[...], ln2,
                         preferred_element_type=jnp.float32)  # (B, D)
        pred = jnp.sum(pooled * wpred_ref[...], axis=-1, keepdims=True)  # (B,1)
        o_ref[...] = jnp.broadcast_to(pred, (batch, o_ref.shape[-1]))


# ----------------------------------------------------------------------------
# One-time parameter preparation (stacking, q-scale folding, bf16 casting,
# attn_out/ff weight merging).  Hoisted out of the per-call forward.
# ----------------------------------------------------------------------------
def prepare_params(params, cfg):
    D = cfg["dim"]
    heads, d = cfg["heads"], cfg["dim_head"]
    hd = heads * d
    scale = d ** -0.5

    gammas = jnp.stack([lyr["gamma"] for lyr in params["layers"]], axis=0)  # (L,1,D)
    w_fused = jnp.stack(
        [lyr["w_fused_t"].at[:, :hd].multiply(scale) for lyr in params["layers"]],
        axis=0).astype(jnp.bfloat16)                          # (L, D, F)
    # merged output projection: [W_attn_out ; W_ff] stacked along rows
    w_out = jnp.stack(
        [jnp.concatenate([lyr["w_attn_out_t"], lyr["w_ff_t"]], axis=0)
         for lyr in params["layers"]],
        axis=0).astype(jnp.bfloat16)                          # (L, h*d+ffi, D)

    return {
        "token_emb": params["token_emb"],
        "prompt_embed": params["prompt_embed"],
        "response_embed": params["response_embed"],
        "gammas": gammas,
        "w_fused": w_fused,
        "w_out": w_out,
        "final_gamma": params["final_gamma"],
        "w_pred_row": params["w_pred_t"].T,                   # (1, D)
    }


# ----------------------------------------------------------------------------
# Full RewardModel forward (labels=None path -> returns pred of shape (B,))
# ----------------------------------------------------------------------------
def reward_model_forward(tokens, prompt_mask, prepped, cfg):
    # token embedding + extra prompt/response embedding (plain-JAX glue)
    x = jnp.take(prepped["token_emb"], tokens, axis=0)        # (B, N, D) f32
    if prompt_mask is not None:
        extra = jnp.where(prompt_mask[..., None],
                          prepped["prompt_embed"], prepped["response_embed"])
        x = x + extra

    B, N, D = x.shape
    heads, d = cfg["heads"], cfg["dim_head"]
    hd = heads * d
    ff_inner = cfg["dim"] * cfg["ff_mult"]
    depth = cfg["depth"]
    bn = B * N
    fused_out = prepped["w_fused"].shape[-1]

    x2d = x.reshape(bn, D)                                    # batch folded into rows

    # rotary table, tiled for the sublane-stacked [q_h0..q_h{H-1} | k] layout.
    # sign of rotate_half is folded into sin so the kernel needs no negate.
    inv_freq = 1.0 / (10000.0 ** (jnp.arange(0, d, 2, dtype=jnp.float32) / d))
    freqs = jnp.arange(N, dtype=jnp.float32)[:, None] * inv_freq[None, :]  # (N, d/2)
    cos = jnp.cos(jnp.concatenate([freqs, freqs], axis=-1))                # (N, d)
    sin_f = jnp.sin(freqs)
    sin_signed = jnp.concatenate([-sin_f, sin_f], axis=-1)                 # (N, d)
    reps = (heads + 1) * B
    cossin = jnp.concatenate([jnp.tile(cos, (reps, 1)),
                              jnp.tile(sin_signed, (reps, 1))], axis=-1)   # ((H+1)*bn, 2d)

    # additive causal + cross-batch (block-diagonal) mask bias, head-tiled.
    rows = jnp.arange(bn)
    cols = jnp.arange(bn)
    same_b = (rows[:, None] // N) == (cols[None, :] // N)
    causal = (cols[None, :] % N) <= (rows[:, None] % N)
    bias = jnp.where(same_b & causal, 0.0, NEG_BIG).astype(jnp.float32)    # (bn, bn)
    mask_bias = jnp.tile(bias, (heads, 1))                                 # (H*bn, bn)

    # mean-pool matrix: pool[b, c] = 1/N for c in batch b's rows.
    pool = jnp.where(jnp.arange(B)[:, None] == (jnp.arange(bn)[None, :] // N),
                     1.0 / N, 0.0).astype(jnp.float32)                     # (B, bn)

    kernel = functools.partial(_fused_palm_kernel, heads=heads, dim_head=d,
                               ff_inner=ff_inner, batch=B, seq=N)

    out = pl.pallas_call(
        kernel,
        out_shape=jax.ShapeDtypeStruct((B, 128), jnp.float32),
        grid=(depth,),
        in_specs=[
            pl.BlockSpec((bn, D), lambda l: (0, 0)),                      # x (flat)
            pl.BlockSpec((1, 1, D), lambda l: (l, 0, 0)),                 # gamma
            pl.BlockSpec((1, D, fused_out), lambda l: (l, 0, 0)),         # w_fused
            pl.BlockSpec((1, hd + ff_inner, D), lambda l: (l, 0, 0)),     # merged out proj
            pl.BlockSpec(((heads + 1) * bn, 2 * d), lambda l: (0, 0)),    # cos||sin
            pl.BlockSpec((heads * bn, bn), lambda l: (0, 0)),             # mask bias
            pl.BlockSpec((B, bn), lambda l: (0, 0)),                      # pool matrix
            pl.BlockSpec((1, D), lambda l: (0, 0)),                       # final gamma
            pl.BlockSpec((1, D), lambda l: (0, 0)),                       # w_pred row
        ],
        out_specs=pl.BlockSpec((B, 128), lambda l: (0, 0)),
        scratch_shapes=[pltpu.VMEM((bn, D), jnp.float32)],                # layer carry
        compiler_params=pltpu.CompilerParams(
            dimension_semantics=("arbitrary",)),
    )(x2d, prepped["gammas"], prepped["w_fused"], prepped["w_out"],
      cossin, mask_bias, pool, prepped["final_gamma"], prepped["w_pred_row"])

    return out[:, 0]                                          # (B,)


# ----------------------------------------------------------------------------
# Deterministic parameter init (synthetic; shapes follow the PyTorch __init__)
# Linear weights are stored TRANSPOSED vs PyTorch, i.e. (in_dim, out_dim).
# ----------------------------------------------------------------------------
def init_params(key, cfg):
    D = cfg["dim"]
    heads, d = cfg["heads"], cfg["dim_head"]
    attn_inner = heads * d
    ff_inner = D * cfg["ff_mult"]
    fused_out = attn_inner + d + d + 2 * ff_inner

    keys = jax.random.split(key, 2 + 3 * cfg["depth"] + 1)
    ki = iter(keys)

    params = {
        "token_emb": 0.02 * jax.random.normal(next(ki), (cfg["num_tokens"], D),
                                              dtype=jnp.float32),
        "prompt_embed": jnp.zeros((1, 1, D), jnp.float32),
        "response_embed": jnp.zeros((1, 1, D), jnp.float32),
        "layers": [],
        "final_gamma": jnp.ones((1, D), jnp.float32),
        "w_pred_t": 0.02 * jax.random.normal(next(ki), (D, 1), dtype=jnp.float32),
    }
    for _ in range(cfg["depth"]):
        params["layers"].append({
            "gamma": jnp.ones((1, D), jnp.float32),
            "w_fused_t": 0.02 * jax.random.normal(next(ki), (D, fused_out),
                                                  dtype=jnp.float32),
            "w_attn_out_t": 0.02 * jax.random.normal(next(ki), (attn_inner, D),
                                                     dtype=jnp.float32),
            "w_ff_t": 0.02 * jax.random.normal(next(ki), (ff_inner, D),
                                               dtype=jnp.float32),
        })
    return params


if __name__ == "__main__":
    cfg = dict(dim=128, dim_head=64, heads=2, ff_mult=4, depth=2,
               num_tokens=256)
    B, N = 2, 8

    key = jax.random.PRNGKey(0)
    kp, kt = jax.random.split(key)
    params = init_params(kp, cfg)
    prepped = prepare_params(params, cfg)          # one-time weight prep

    tokens = jax.random.randint(kt, (B, N), 0, cfg["num_tokens"], dtype=jnp.int32)
    prompt_mask = jnp.broadcast_to(jnp.arange(N) < (N // 2), (B, N))

    pred = reward_model_forward(tokens, prompt_mask, prepped, cfg)
    pred = jax.block_until_ready(pred)
    assert pred.shape == (B,), pred.shape
    # TODO(synk): labels / mse-loss branch of RewardModel.forward not exercised
    # (labels=None path, matching the default inference call).
    print("KERNEL_OK")
</pallas_src>

<mosaic_0001>
module attributes {stable_mosaic.version = 11 : i64} {
  func.func @_fused_palm_kernel(%arg0: i32, %arg1: memref<16x128xf32, #tpu.memory_space<vmem>>, %arg2: memref<1x1x128xf32, #tpu.memory_space<vmem>>, %arg3: memref<1x128x1280xbf16, #tpu.memory_space<vmem>>, %arg4: memref<1x640x128xbf16, #tpu.memory_space<vmem>>, %arg5: memref<48x128xf32, #tpu.memory_space<vmem>>, %arg6: memref<32x16xf32, #tpu.memory_space<vmem>>, %arg7: memref<2x16xf32, #tpu.memory_space<vmem>>, %arg8: memref<1x128xf32, #tpu.memory_space<vmem>>, %arg9: memref<1x128xf32, #tpu.memory_space<vmem>>, %arg10: memref<2x128xf32, #tpu.memory_space<vmem>>, %arg11: memref<16x128xf32, #tpu.memory_space<vmem>>) attributes {dimension_semantics = [#tpu.dimension_semantics<arbitrary>], iteration_bounds = array<i64: 2>, scalar_prefetch = 0 : i64, scratch_operands = 1 : i64, tpu.core_type = #tpu.core_type<tc>, window_params = [{pipeline_mode = #tpu.pipeline_mode<synchronous>, transform_indices = @transform_0, window_bounds = array<i64: 16, 128>}, {transform_indices = @transform_1, window_bounds = array<i64: 1, 1, 128>}, {transform_indices = @transform_2, window_bounds = array<i64: 1, 128, 1280>}, {transform_indices = @transform_3, window_bounds = array<i64: 1, 640, 128>}, {pipeline_mode = #tpu.pipeline_mode<synchronous>, transform_indices = @transform_4, window_bounds = array<i64: 48, 128>}, {pipeline_mode = #tpu.pipeline_mode<synchronous>, transform_indices = @transform_5, window_bounds = array<i64: 32, 16>}, {pipeline_mode = #tpu.pipeline_mode<synchronous>, transform_indices = @transform_6, window_bounds = array<i64: 2, 16>}, {pipeline_mode = #tpu.pipeline_mode<synchronous>, transform_indices = @transform_7, window_bounds = array<i64: 1, 128>}, {pipeline_mode = #tpu.pipeline_mode<synchronous>, transform_indices = @transform_8, window_bounds = array<i64: 1, 128>}, {pipeline_mode = #tpu.pipeline_mode<synchronous>, transform_indices = @transform_9, window_bounds = array<i64: 2, 128>}]} {
    %c0_i32 = arith.constant 0 : i32
    %0 = arith.cmpi eq, %arg0, %c0_i32 : i32
    %1 = arith.extui %0 : i1 to i32
    %c0_i32_0 = arith.constant 0 : i32
    %2 = arith.cmpi ne, %1, %c0_i32_0 : i32
    scf.if %2 {
      %c0_30 = arith.constant 0 : index
      %c0_31 = arith.constant 0 : index
      %87 = vector.load %arg1[%c0_30, %c0_31] : memref<16x128xf32, #tpu.memory_space<vmem>>, vector<16x128xf32>
      %c0_32 = arith.constant 0 : index
      %c0_33 = arith.constant 0 : index
      %88 = vector.load %arg11[%c0_32, %c0_33] : memref<16x128xf32, #tpu.memory_space<vmem>>, vector<16x128xf32>
      tpu.vector_store %arg11[%c0_32, %c0_33], %87 {strides = array<i32>} : memref<16x128xf32, #tpu.memory_space<vmem>>, vector<16x128xf32>,
    } else {
    }
    %c0 = arith.constant 0 : index
    %c0_1 = arith.constant 0 : index
    %3 = vector.load %arg11[%c0, %c0_1] : memref<16x128xf32, #tpu.memory_space<vmem>>, vector<16x128xf32>
    %cst = arith.constant dense<0.000000e+00> : vector<16xf32>
    %4 = vector.multi_reduction <add>, %3, %cst [1] : vector<16x128xf32> to vector<16xf32>
    %5 = vector.shape_cast %4 : vector<16xf32> to vector<16x1xf32>
    %cst_2 = arith.constant 1.280000e+02 : f32
    %6 = vector.broadcast %cst_2 : f32 to vector<16x1xf32>
    %7 = arith.divf %5, %6 : vector<16x1xf32>
    %8 = vector.broadcast %7 : vector<16x1xf32> to vector<16x128xf32>
    %9 = arith.subf %3, %8 : vector<16x128xf32>
    %10 = arith.mulf %9, %9 : vector<16x128xf32>
    %cst_3 = arith.constant dense<0.000000e+00> : vector<16xf32>
    %11 = vector.multi_reduction <add>, %10, %cst_3 [1] : vector<16x128xf32> to vector<16xf32>
    %12 = vector.shape_cast %11 : vector<16xf32> to vector<16x1xf32>
    %cst_4 = arith.constant 1.280000e+02 : f32
    %13 = vector.broadcast %cst_4 : f32 to vector<16x1xf32>
    %14 = arith.divf %12, %13 : vector<16x1xf32>
    %15 = vector.broadcast %7 : vector<16x1xf32> to vector<16x128xf32>
    %16 = arith.subf %3, %15 : vector<16x128xf32>
    %cst_5 = arith.constant 9.99999974E-6 : f32
    %17 = vector.broadcast %cst_5 : f32 to vector<16x1xf32>
    %18 = arith.addf %14, %17 : vector<16x1xf32>
    %19 = math.rsqrt %18 : vector<16x1xf32>
    %20 = vector.broadcast %19 : vector<16x1xf32> to vector<16x128xf32>
    %21 = arith.mulf %16, %20 : vector<16x128xf32>
    %c0_6 = arith.constant 0 : index
    %c0_7 = arith.constant 0 : index
    %c0_8 = arith.constant 0 : index
    %22 = vector.load %arg2[%c0_6, %c0_7, %c0_8] : memref<1x1x128xf32, #tpu.memory_space<vmem>>, vector<1x1x128xf32>
    %23 = vector.shape_cast %22 : vector<1x1x128xf32> to vector<1x128xf32>
    %24 = vector.broadcast %23 : vector<1x128xf32> to vector<16x128xf32>
    %25 = arith.mulf %21, %24 : vector<16x128xf32>
    %26 = arith.truncf %25 : vector<16x128xf32> to vector<16x128xbf16>
    %c0_9 = arith.constant 0 : index
    %c0_10 = arith.constant 0 : index
    %c0_11 = arith.constant 0 : index
    %27 = vector.load %arg3[%c0_9, %c0_10, %c0_11] : memref<1x128x1280xbf16, #tpu.memory_space<vmem>>, vector<1x128x1280xbf16>
    %28 = vector.shape_cast %27 : vector<1x128x1280xbf16> to vector<128x1280xbf16>
    %cst_12 = arith.constant dense<0.000000e+00> : vector<16x1280xf32>
    %29 = tpu.matmul %26, %28, %cst_12 {dimension_numbers = #tpu.dot_dimension_numbers<[1], [0], [0], [1], [0, 0, 1, 1], [], []>} : vector<16x128xbf16>, vector<128x1280xbf16>, vector<16x1280xf32> -> vector<16x1280xf32>
    %30 = vector.extract_strided_slice %29 {offsets = [0, 0], sizes = [16, 128], strides = [1, 1]} : vector<16x1280xf32> to vector<16x128xf32>
    %31 = vector.extract_strided_slice %29 {offsets = [0, 128], sizes = [16, 64], strides = [1, 1]} : vector<16x1280xf32> to vector<16x64xf32>
    %32 = vector.extract_strided_slice %29 {offsets = [0, 192], sizes = [16, 64], strides = [1, 1]} : vector<16x1280xf32> to vector<16x64xf32>
    %33 = vector.extract_strided_slice %29 {offsets = [0, 256], sizes = [16, 1024], strides = [1, 1]} : vector<16x1280xf32> to vector<16x1024xf32>
    %34 = vector.extract_strided_slice %30 {offsets = [0, 0], sizes = [16, 64], strides = [1, 1]} : vector<16x128xf32> to vector<16x64xf32>
    %35 = vector.extract_strided_slice %30 {offsets = [0, 64], sizes = [16, 64], strides = [1, 1]} : vector<16x128xf32> to vector<16x64xf32>
    %36 = tpu.concatenate %34, %35, %31 in 0 : vector<16x64xf32>, vector<16x64xf32>, vector<16x64xf32> -> vector<48x64xf32>
    %c0_13 = arith.constant 0 : index
    %c0_14 = arith.constant 0 : index
    %37 = vector.load %arg5[%c0_13, %c0_14] : memref<48x128xf32, #tpu.memory_space<vmem>>, vector<48x64xf32>
    %c0_15 = arith.constant 0 : index
    %c64 = arith.constant 64 : index
    %38 = vector.load %arg5[%c0_15, %c64] : memref<48x128xf32, #tpu.memory_space<vmem>>, vector<48x64xf32>
    %39 = arith.mulf %36, %37 : vector<48x64xf32>
    %40 = vector.extract_strided_slice %36 {offsets = [0, 32], sizes = [48, 32], strides = [1, 1]} : vector<48x64xf32> to vector<48x32xf32>
    %41 = vector.extract_strided_slice %36 {offsets = [0, 0], sizes = [48, 32], strides = [1, 1]} : vector<48x64xf32> to vector<48x32xf32>
    %42 = tpu.concatenate %40, %41 in 1 : vector<48x32xf32>, vector<48x32xf32> -> vector<48x64xf32>
    %43 = arith.mulf %42, %38 : vector<48x64xf32>
    %44 = arith.addf %39, %43 : vector<48x64xf32>
    %45 = vector.extract_strided_slice %44 {offsets = [0, 0], sizes = [32, 64], strides = [1, 1]} : vector<48x64xf32> to vector<32x64xf32>
    %46 = vector.extract_strided_slice %44 {offsets = [32, 0], sizes = [16, 64], strides = [1, 1]} : vector<48x64xf32> to vector<16x64xf32>
    %47 = arith.truncf %45 : vector<32x64xf32> to vector<32x64xbf16>
    %48 = arith.truncf %46 : vector<16x64xf32> to vector<16x64xbf16>
    %cst_16 = arith.constant dense<0.000000e+00> : vector<32x16xf32>
    %49 = tpu.matmul %47, %48, %cst_16 {dimension_numbers = #tpu.dot_dimension_numbers<[1], [1], [0], [0], [0, 0, 1, 0], [], []>} : vector<32x64xbf16>, vector<16x64xbf16>, vector<32x16xf32> -> vector<32x16xf32>
    %c0_17 = arith.constant 0 : index
    %c0_18 = arith.constant 0 : index
    %50 = vector.load %arg6[%c0_17, %c0_18] : memref<32x16xf32, #tpu.memory_space<vmem>>, vector<32x16xf32>
    %51 = arith.addf %49, %50 : vector<32x16xf32>
    %cst_19 = arith.constant dense<0xFF800000> : vector<32xf32>
    %52 = vector.multi_reduction <maximumf>, %51, %cst_19 [1] : vector<32x16xf32> to vector<32xf32>
    %53 = vector.shape_cast %52 : vector<32xf32> to vector<32x1xf32>
    %54 = vector.broadcast %53 : vector<32x1xf32> to vector<32x16xf32>
    %55 = arith.subf %51, %54 : vector<32x16xf32>
    %56 = math.exp %55 : vector<32x16xf32>
    %cst_20 = arith.constant dense<0.000000e+00> : vector<32xf32>
    %57 = vector.multi_reduction <add>, %56, %cst_20 [1] : vector<32x16xf32> to vector<32xf32>
    %58 = vector.shape_cast %57 : vector<32xf32> to vector<32x1xf32>
    %59 = tpu.reciprocal %58 {approx = true} : vector<32x1xf32> -> vector<32x1xf32>
    %60 = vector.broadcast %59 : vector<32x1xf32> to vector<32x16xf32>
    %61 = arith.mulf %56, %60 : vector<32x16xf32>
    %62 = arith.truncf %61 : vector<32x16xf32> to vector<32x16xbf16>
    %63 = arith.truncf %32 : vector<16x64xf32> to vector<16x64xbf16>
    %cst_21 = arith.constant dense<0.000000e+00> : vector<32x64xf32>
    %64 = tpu.matmul %62, %63, %cst_21 {dimension_numbers = #tpu.dot_dimension_numbers<[1], [0], [0], [1], [0, 0, 1, 1], [], []>} : vector<32x16xbf16>, vector<16x64xbf16>, vector<32x64xf32> -> vector<32x64xf32>
    %65 = vector.extract_strided_slice %64 {offsets = [0, 0], sizes = [16, 64], strides = [1, 1]} : vector<32x64xf32> to vector<16x64xf32>
    %66 = vector.extract_strided_slice %64 {offsets = [16, 0], sizes = [16, 64], strides = [1, 1]} : vector<32x64xf32> to vector<16x64xf32>
    %67 = tpu.concatenate %65, %66 in 1 : vector<16x64xf32>, vector<16x64xf32> -> vector<16x128xf32>
    %68 = vector.extract_strided_slice %33 {offsets = [0, 0], sizes = [16, 512], strides = [1, 1]} : vector<16x1024xf32> to vector<16x512xf32>
    %69 = vector.extract_strided_slice %33 {offsets = [0, 512], sizes = [16, 512], strides = [1, 1]} : vector<16x1024xf32> to vector<16x512xf32>
    %70 = arith.mulf %68, %69 : vector<16x512xf32>
    %71 = arith.negf %69 : vector<16x512xf32>
    %72 = math.exp %71 : vector<16x512xf32>
    %cst_22 = arith.constant 1.000000e+00 : f32
    %73 = vector.broadcast %cst_22 : f32 to vector<16x512xf32>
    %74 = arith.addf %73, %72 : vector<16x512xf32>
    %75 = arith.divf %73, %74 : vector<16x512xf32>
    %76 = arith.mulf %70, %75 : vector<16x512xf32>
    %77 = tpu.concatenate %67, %76 in 1 : vector<16x128xf32>, vector<16x512xf32> -> vector<16x640xf32>
    %78 = arith.truncf %77 : vector<16x640xf32> to vector<16x640xbf16>
    %c0_23 = arith.constant 0 : index
    %c0_24 = arith.constant 0 : index
    %c0_25 = arith.constant 0 : index
    %79 = vector.load %arg4[%c0_23, %c0_24, %c0_25] : memref<1x640x128xbf16, #tpu.memory_space<vmem>>, vector<1x640x128xbf16>
    %80 = vector.shape_cast %79 : vector<1x640x128xbf16> to vector<640x128xbf16>
    %cst_26 = arith.constant dense<0.000000e+00> : vector<16x128xf32>
    %81 = tpu.matmul %78, %80, %cst_26 {dimension_numbers = #tpu.dot_dimension_numbers<[1], [0], [0], [1], [0, 0, 1, 1], [], []>} : vector<16x640xbf16>, vector<640x128xbf16>, vector<16x128xf32> -> vector<16x128xf32>
    %82 = arith.addf %81, %3 : vector<16x128xf32>
    %c0_27 = arith.constant 0 : index
    %c0_28 = arith.constant 0 : index
    %83 = vector.load %arg11[%c0_27, %c0_28] : memref<16x128xf32, #tpu.memory_space<vmem>>, vector<16x128xf32>
    tpu.vector_store %arg11[%c0_27, %c0_28], %82 {strides = array<i32>} : memref<16x128xf32, #tpu.memory_space<vmem>>, vector<16x128xf32>,
    %c1_i32 = arith.constant 1 : i32
    %84 = arith.cmpi eq, %arg0, %c1_i32 : i32
    %85 = arith.extui %84 : i1 to i32
    %c0_i32_29 = arith.constant 0 : i32
    %86 = arith.cmpi ne, %85, %c0_i32_29 : i32
    scf.if %86 {
      %cst_30 = arith.constant dense<0.000000e+00> : vector<16xf32>
      %87 = vector.multi_reduction <add>, %82, %cst_30 [1] : vector<16x128xf32> to vector<16xf32>
      %88 = vector.shape_cast %87 : vector<16xf32> to vector<16x1xf32>
      %cst_31 = arith.constant 1.280000e+02 : f32
      %89 = vector.broadcast %cst_31 : f32 to vector<16x1xf32>
      %90 = arith.divf %88, %89 : vector<16x1xf32>
      %91 = vector.broadcast %90 : vector<16x1xf32> to vector<16x128xf32>
      %92 = arith.subf %82, %91 : vector<16x128xf32>
      %93 = arith.mulf %92, %92 : vector<16x128xf32>
      %cst_32 = arith.constant dense<0.000000e+00> : vector<16xf32>
      %94 = vector.multi_reduction <add>, %93, %cst_32 [1] : vector<16x128xf32> to vector<16xf32>
      %95 = vector.shape_cast %94 : vector<16xf32> to vector<16x1xf32>
      %cst_33 = arith.constant 1.280000e+02 : f32
      %96 = vector.broadcast %cst_33 : f32 to vector<16x1xf32>
      %97 = arith.divf %95, %96 : vector<16x1xf32>
      %98 = vector.broadcast %90 : vector<16x1xf32> to vector<16x128xf32>
      %99 = arith.subf %82, %98 : vector<16x128xf32>
      %cst_34 = arith.constant 9.99999974E-6 : f32
      %100 = vector.broadcast %cst_34 : f32 to vector<16x1xf32>
      %101 = arith.addf %97, %100 : vector<16x1xf32>
      %102 = math.rsqrt %101 : vector<16x1xf32>
      %103 = vector.broadcast %102 : vector<16x1xf32> to vector<16x128xf32>
      %104 = arith.mulf %99, %103 : vector<16x128xf32>
      %c0_35 = arith.constant 0 : index
      %c0_36 = arith.constant 0 : index
      %105 = vector.load %arg8[%c0_35, %c0_36] : memref<1x128xf32, #tpu.memory_space<vmem>>, vector<1x128xf32>
      %106 = vector.broadcast %105 : vector<1x128xf32> to vector<16x128xf32>
      %107 = arith.mulf %104, %106 : vector<16x128xf32>
      %c0_37 = arith.constant 0 : index
      %c0_38 = arith.constant 0 : index
      %108 = vector.load %arg7[%c0_37, %c0_38] : memref<2x16xf32, #tpu.memory_space<vmem>>, vector<2x16xf32>
      %cst_39 = arith.constant dense<0.000000e+00> : vector<2x128xf32>
      %109 = tpu.matmul %108, %107, %cst_39 {dimension_numbers = #tpu.dot_dimension_numbers<[1], [0], [0], [1], [0, 0, 1, 1], [], []>} : vector<2x16xf32>, vector<16x128xf32>, vector<2x128xf32> -> vector<2x128xf32>
      %c0_40 = arith.constant 0 : index
      %c0_41 = arith.constant 0 : index
      %110 = vector.load %arg9[%c0_40, %c0_41] : memref<1x128xf32, #tpu.memory_space<vmem>>, vector<1x128xf32>
      %111 = vector.broadcast %110 : vector<1x128xf32> to vector<2x128xf32>
      %112 = arith.mulf %109, %111 : vector<2x128xf32>
      %cst_42 = arith.constant dense<0.000000e+00> : vector<2xf32>
      %113 = vector.multi_reduction <add>, %112, %cst_42 [1] : vector<2x128xf32> to vector<2xf32>
      %114 = vector.shape_cast %113 : vector<2xf32> to vector<2x1xf32>
      %115 = vector.shape_cast %114 : vector<2x1xf32> to vector<2x1xf32>
      %116 = vector.broadcast %115 : vector<2x1xf32> to vector<2x128xf32>
      %c0_43 = arith.constant 0 : index
      %c0_44 = arith.constant 0 : index
      %117 = vector.load %arg10[%c0_43, %c0_44] : memref<2x128xf32, #tpu.memory_space<vmem>>, vector<2x128xf32>
      tpu.vector_store %arg10[%c0_43, %c0_44], %116 {strides = array<i32>} : memref<2x128xf32, #tpu.memory_space<vmem>>, vector<2x128xf32>,
    } else {
    }
    return
  }
  func.func @transform_0(%arg0: i32) -> (i32, i32) {
    %c0_i32 = arith.constant 0 : i32
    %c0_i32_0 = arith.constant 0 : i32
    %c0_i32_1 = arith.constant 0 : i32
    return %c0_i32, %c0_i32_0 : i32, i32
  }
  func.func @transform_1(%arg0: i32) -> (i32, i32, i32) {
    %c0_i32 = arith.constant 0 : i32
    %c0_i32_0 = arith.constant 0 : i32
    %c0_i32_1 = arith.constant 0 : i32
    return %arg0, %c0_i32, %c0_i32_0 : i32, i32, i32
  }
  func.func @transform_2(%arg0: i32) -> (i32, i32, i32) {
    %c0_i32 = arith.constant 0 : i32
    %c0_i32_0 = arith.constant 0 : i32
    %c0_i32_1 = arith.constant 0 : i32
    return %arg0, %c0_i32, %c0_i32_0 : i32, i32, i32
  }
  func.func @transform_3(%arg0: i32) -> (i32, i32, i32) {
    %c0_i32 = arith.constant 0 : i32
    %c0_i32_0 = arith.constant 0 : i32
    %c0_i32_1 = arith.constant 0 : i32
    return %arg0, %c0_i32, %c0_i32_0 : i32, i32, i32
  }
  func.func @transform_4(%arg0: i32) -> (i32, i32) {
    %c0_i32 = arith.constant 0 : i32
    %c0_i32_0 = arith.constant 0 : i32
    %c0_i32_1 = arith.constant 0 : i32
    return %c0_i32, %c0_i32_0 : i32, i32
  }
  func.func @transform_5(%arg0: i32) -> (i32, i32) {
    %c0_i32 = arith.constant 0 : i32
    %c0_i32_0 = arith.constant 0 : i32
    %c0_i32_1 = arith.constant 0 : i32
    return %c0_i32, %c0_i32_0 : i32, i32
  }
  func.func @transform_6(%arg0: i32) -> (i32, i32) {
    %c0_i32 = arith.constant 0 : i32
    %c0_i32_0 = arith.constant 0 : i32
    %c0_i32_1 = arith.constant 0 : i32
    return %c0_i32, %c0_i32_0 : i32, i32
  }
  func.func @transform_7(%arg0: i32) -> (i32, i32) {
    %c0_i32 = arith.constant 0 : i32
    %c0_i32_0 = arith.constant 0 : i32
    %c0_i32_1 = arith.constant 0 : i32
    return %c0_i32, %c0_i32_0 : i32, i32
  }
  func.func @transform_8(%arg0: i32) -> (i32, i32) {
    %c0_i32 = arith.constant 0 : i32
    %c0_i32_0 = arith.constant 0 : i32
    %c0_i32_1 = arith.constant 0 : i32
    return %c0_i32, %c0_i32_0 : i32, i32
  }
  func.func @transform_9(%arg0: i32) -> (i32, i32) {
    %c0_i32 = arith.constant 0 : i32
    %c0_i32_0 = arith.constant 0 : i32
    %c0_i32_1 = arith.constant 0 : i32
    return %c0_i32, %c0_i32_0 : i32, i32
  }
}

</mosaic_0001>

<llo_original>
// kernel: tpu_custom_call.1
$region0: #{tpu_custom_call.1}
  #allocation0 [shape = 'u32[]', space=smem, size = 0x4, offset = 0x4, fixed_abs, tag = 'smem constant byte address 0x4 - core index']
  #allocation1 [shape = 'u32[144,128]{1,0:T(1,128)}', space=vmem, size = 0x12000, scoped, tag = 'internal scratch']
  #allocation2 [shape = 'f32[16,128]{1,0:T(8,128)}', space=vmem, size = 0x2000, scoped, tag = 'scratch operand']
  %s0 = inlined_call_operand.hbm [shape: f32[16,128], index: 0, kind: input, shape index: {}]
  %s1 = inlined_call_operand.vmem [shape: f32[2,1,128], index: 1, kind: input, shape index: {}]
  %s2 = inlined_call_operand.hbm [shape: bf16[2,128,1280], index: 2, kind: input, shape index: {}]
  %s3 = inlined_call_operand.hbm [shape: bf16[2,640,128], index: 3, kind: input, shape index: {}]
  %s4 = inlined_call_operand.vmem [shape: f32[48,128], index: 4, kind: input, shape index: {}]
  %s5 = inlined_call_operand.vmem [shape: f32[32,16], index: 5, kind: input, shape index: {}]
  %s6 = inlined_call_operand.vmem [shape: f32[2,16], index: 6, kind: input, shape index: {}]
  %s7 = inlined_call_operand.vmem [shape: f32[1,128], index: 7, kind: input, shape index: {}]
  %s8 = inlined_call_operand.vmem [shape: f32[1,128], index: 8, kind: input, shape index: {}]
  %s9 = inlined_call_operand.hbm [shape: f32[2,128], index: 9, kind: output, shape index: {}]
  %s10 = sld [smem:[#allocation0]]
  $region89: #{tpu_custom_call.1} parent=0
    _
  %s12 = ssub.s32 1, %s10
  %s13 = scalar_select 0, %s12, %s10
  $region1: #{tpu_custom_call.1} parent=0
    #allocation3 [shape = 'u8[8192]{0}', space=vmem, size = 0x2000, scoped, tag = 'input window, operand 0, single buffered']
    #allocation4 [shape = 's32[2]{0}', space=sflag, size = 0x8, scoped, tag = 'scoped memory for tpu_custom_call.1']
    #allocation5 [shape = 's32[2]{0}', space=sflag, size = 0x8, scoped, tag = 'scoped memory for tpu_custom_call.1']
    #allocation6 [shape = 'u8[655360]{0}', space=vmem, size = 0xa0000, scoped, tag = 'input window, operand 2']
    #allocation7 [shape = 's32[2]{0}', space=sflag, size = 0x8, scoped, tag = 'scoped memory for tpu_custom_call.1']
    #allocation8 [shape = 'u8[327680]{0}', space=vmem, size = 0x50000, scoped, tag = 'input window, operand 3']
    #allocation9 [shape = 'u8[1024]{0}', space=vmem, size = 0x400, scoped, tag = 'output window, operand 0, single buffered']
    %14 = vsyncpa [#allocation4], 0
    %15 = vsyncpa [#allocation7], 0
    %s16 = scalar_lea.sflag [#allocation7], 1
    %17 = vsyncpa %s16, 0
    %18 = vsyncpa [#allocation5], 0
    loop: start=0, step=1, limit=4
    $region2: #{tpu_custom_call.1} parent=1 // loop_pre_header
      _
    $region3: #{tpu_custom_call.1} parent=1 // loop_header
      %s20 = sphi 0, %s24
      %p21 = scmp.ge.s32.totalorder %s20, 4
      %s28 = sphi 0, %s28
      %s30 = sphi 0, %s28
      %s31 = sphi 0, %s30
      %s45 = sphi 0, %s31
      %s51 = sphi 0, %s53
      %s54 = sphi 0, %s51
      %s55 = sphi 0, %s54
      %s71 = sphi 0, %s55
      %s77 = sphi 0, %s79
      %s80 = sphi 0, %s77
      %s81 = sphi 0, %s80
      %s97 = sphi 0, %s81
      %s103 = sphi 0, %s105
      %s106 = sphi 0, %s103
      %s107 = sphi 0, %s106
      %s123 = sphi 0, %s107
      %s127 = sphi 0, %s127
      %s129 = sphi 0, %s127
      %s130 = sphi 0, %s129
      %s144 = sphi 0, %s130
      %s148 = sphi 0, %s148
      %s150 = sphi 0, %s148
      %s151 = sphi 0, %s150
      %s165 = sphi 0, %s151
      %s169 = sphi 0, %s169
      %s171 = sphi 0, %s169
      %s172 = sphi 0, %s171
      %s186 = sphi 0, %s172
      %s190 = sphi 0, %s190
      %s192 = sphi 0, %s190
      %s193 = sphi 0, %s192
      %s207 = sphi 0, %s193
      %s211 = sphi 0, %s211
      %s213 = sphi 0, %s211
      %s214 = sphi 0, %s213
      %s228 = sphi 0, %s214
      %s232 = sphi 0, %s232
      %s234 = sphi 0, %s232
      %s235 = sphi 0, %s234
      %s249 = sphi 0, %s235
    $region4: #{tpu_custom_call.1} parent=1 // loop_header_branch
      %23 = sbr.rel (%p21) target = $region8
    $region5: #{tpu_custom_call.1} parent=1 // loop_body
      %s25 = ssub.s32 %s20, 1
      %s26 = ssub.s32 %s20, 2
      %s27 = sadd.s32 %s20, 1
      %s29 = sadd.s32 %s28, 1
      %p32 = scmp.eq.s32.totalorder %s20, 1
      %p33 = scmp.ne.s32.totalorder %s28, %s30
      %p34 = scmp.eq.s32.totalorder %s20, 0
      %p35 = por %p33, %p34
      %p36 = scmp.ne.s32.totalorder %s28, %s30
      %p37 = scmp.eq.s32.totalorder %s25, 1
      %p38 = por %p36, %p37
      %p39 = scmp.ne.s32.totalorder %s30, %s31
      %p40 = scmp.eq.s32.totalorder %s25, 0
      %p41 = por %p39, %p40
      %p42 = scmp.ne.s32.totalorder %s30, %s31
      %p43 = scmp.eq.s32.totalorder %s26, 1
      %p44 = por %p42, %p43
      %p46 = scmp.ne.s32.totalorder %s31, %s45
      %p47 = scmp.eq.s32.totalorder %s26, 0
      %p48 = por %p46, %p47
      %s49 = ssub.s32 %s20, %s27
      %p50 = scmp.eq.s32.totalorder %s49, 0
      %s52 = sadd.s32 %s51, 1
      %s53 = scalar_select %p50, %s51, %s52
      %p56 = pneg %p50
      %p57 = scmp.eq.s32.totalorder %s20, 1
      %p58 = por %p56, %p57
      %p59 = scmp.ne.s32.totalorder %s51, %s54
      %p60 = scmp.eq.s32.totalorder %s20, 0
      %p61 = por %p59, %p60
      %p62 = scmp.ne.s32.totalorder %s51, %s54
      %p63 = scmp.eq.s32.totalorder %s25, 1
      %p64 = por %p62, %p63
      %p65 = scmp.ne.s32.totalorder %s54, %s55
      %p66 = scmp.eq.s32.totalorder %s25, 0
      %p67 = por %p65, %p66
      %p68 = scmp.ne.s32.totalorder %s54, %s55
      %p69 = scmp.eq.s32.totalorder %s26, 1
      %p70 = por %p68, %p69
      %p72 = scmp.ne.s32.totalorder %s55, %s71
      %p73 = scmp.eq.s32.totalorder %s26, 0
      %p74 = por %p72, %p73
      %s75 = ssub.s32 %s20, %s27
      %p76 = scmp.eq.s32.totalorder %s75, 0
      %s78 = sadd.s32 %s77, 1
      %s79 = scalar_select %p76, %s77, %s78
      %p82 = pneg %p76
      %p83 = scmp.eq.s32.totalorder %s20, 1
      %p84 = por %p82, %p83
      %p85 = scmp.ne.s32.totalorder %s77, %s80
      %p86 = scmp.eq.s32.totalorder %s20, 0
      %p87 = por %p85, %p86
      %p88 = scmp.ne.s32.totalorder %s77, %s80
      %p89 = scmp.eq.s32.totalorder %s25, 1
      %p90 = por %p88, %p89
      %p91 = scmp.ne.s32.totalorder %s80, %s81
      %p92 = scmp.eq.s32.totalorder %s25, 0
      %p93 = por %p91, %p92
      %p94 = scmp.ne.s32.totalorder %s80, %s81
      %p95 = scmp.eq.s32.totalorder %s26, 1
      %p96 = por %p94, %p95
      %p98 = scmp.ne.s32.totalorder %s81, %s97
      %p99 = scmp.eq.s32.totalorder %s26, 0
      %p100 = por %p98, %p99
      %s101 = ssub.s32 %s20, %s27
      %p102 = scmp.eq.s32.totalorder %s101, 0
      %s104 = sadd.s32 %s103, 1
      %s105 = scalar_select %p102, %s103, %s104
      %p108 = pneg %p102
      %p109 = scmp.eq.s32.totalorder %s20, 1
      %p110 = por %p108, %p109
      %p111 = scmp.ne.s32.totalorder %s103, %s106
      %p112 = scmp.eq.s32.totalorder %s20, 0
      %p113 = por %p111, %p112
      %p114 = scmp.ne.s32.totalorder %s103, %s106
      %p115 = scmp.eq.s32.totalorder %s25, 1
      %p116 = por %p114, %p115
      %p117 = scmp.ne.s32.totalorder %s106, %s107
      %p118 = scmp.eq.s32.totalorder %s25, 0
      %p119 = por %p117, %p118
      %p120 = scmp.ne.s32.totalorder %s106, %s107
      %p121 = scmp.eq.s32.totalorder %s26, 1
      %p122 = por %p120, %p121
      %p124 = scmp.ne.s32.totalorder %s107, %s123
      %p125 = scmp.eq.s32.totalorder %s26, 0
      %p126 = por %p124, %p125
      %s128 = sadd.s32 %s127, 1
      %p131 = scmp.eq.s32.totalorder %s20, 1
      %p132 = scmp.ne.s32.totalorder %s127, %s129
      %p133 = scmp.eq.s32.totalorder %s20, 0
      %p134 = por %p132, %p133
      %p135 = scmp.ne.s32.totalorder %s127, %s129
      %p136 = scmp.eq.s32.totalorder %s25, 1
      %p137 = por %p135, %p136
      %p138 = scmp.ne.s32.totalorder %s129, %s130
      %p139 = scmp.eq.s32.totalorder %s25, 0
      %p140 = por %p138, %p139
      %p141 = scmp.ne.s32.totalorder %s129, %s130
      %p142 = scmp.eq.s32.totalorder %s26, 1
      %p143 = por %p141, %p142
      %p145 = scmp.ne.s32.totalorder %s130, %s144
      %p146 = scmp.eq.s32.totalorder %s26, 0
      %p147 = por %p145, %p146
      %s149 = sadd.s32 %s148, 1
      %p152 = scmp.eq.s32.totalorder %s20, 1
      %p153 = scmp.ne.s32.totalorder %s148, %s150
      %p154 = scmp.eq.s32.totalorder %s20, 0
      %p155 = por %p153, %p154
      %p156 = scmp.ne.s32.totalorder %s148, %s150
      %p157 = scmp.eq.s32.totalorder %s25, 1
      %p158 = por %p156, %p157
      %p159 = scmp.ne.s32.totalorder %s150, %s151
      %p160 = scmp.eq.s32.totalorder %s25, 0
      %p161 = por %p159, %p160
      %p162 = scmp.ne.s32.totalorder %s150, %s151
      %p163 = scmp.eq.s32.totalorder %s26, 1
      %p164 = por %p162, %p163
      %p166 = scmp.ne.s32.totalorder %s151, %s165
      %p167 = scmp.eq.s32.totalorder %s26, 0
      %p168 = por %p166, %p167
      %s170 = sadd.s32 %s169, 1
      %p173 = scmp.eq.s32.totalorder %s20, 1
      %p174 = scmp.ne.s32.totalorder %s169, %s171
      %p175 = scmp.eq.s32.totalorder %s20, 0
      %p176 = por %p174, %p175
      %p177 = scmp.ne.s32.totalorder %s169, %s171
      %p178 = scmp.eq.s32.totalorder %s25, 1
      %p179 = por %p177, %p178
      %p180 = scmp.ne.s32.totalorder %s171, %s172
      %p181 = scmp.eq.s32.totalorder %s25, 0
      %p182 = por %p180, %p181
      %p183 = scmp.ne.s32.totalorder %s171, %s172
      %p184 = scmp.eq.s32.totalorder %s26, 1
      %p185 = por %p183, %p184
      %p187 = scmp.ne.s32.totalorder %s172, %s186
      %p188 = scmp.eq.s32.totalorder %s26, 0
      %p189 = por %p187, %p188
      %s191 = sadd.s32 %s190, 1
      %p194 = scmp.eq.s32.totalorder %s20, 1
      %p195 = scmp.ne.s32.totalorder %s190, %s192
      %p196 = scmp.eq.s32.totalorder %s20, 0
      %p197 = por %p195, %p196
      %p198 = scmp.ne.s32.totalorder %s190, %s192
      %p199 = scmp.eq.s32.totalorder %s25, 1
      %p200 = por %p198, %p199
      %p201 = scmp.ne.s32.totalorder %s192, %s193
      %p202 = scmp.eq.s32.totalorder %s25, 0
      %p203 = por %p201, %p202
      %p204 = scmp.ne.s32.totalorder %s192, %s193
      %p205 = scmp.eq.s32.totalorder %s26, 1
      %p206 = por %p204, %p205
      %p208 = scmp.ne.s32.totalorder %s193, %s207
      %p209 = scmp.eq.s32.totalorder %s26, 0
      %p210 = por %p208, %p209
      %s212 = sadd.s32 %s211, 1
      %p215 = scmp.eq.s32.totalorder %s20, 1
      %p216 = scmp.ne.s32.totalorder %s211, %s213
      %p217 = scmp.eq.s32.totalorder %s20, 0
      %p218 = por %p216, %p217
      %p219 = scmp.ne.s32.totalorder %s211, %s213
      %p220 = scmp.eq.s32.totalorder %s25, 1
      %p221 = por %p219, %p220
      %p222 = scmp.ne.s32.totalorder %s213, %s214
      %p223 = scmp.eq.s32.totalorder %s25, 0
      %p224 = por %p222, %p223
      %p225 = scmp.ne.s32.totalorder %s213, %s214
      %p226 = scmp.eq.s32.totalorder %s26, 1
      %p227 = por %p225, %p226
      %p229 = scmp.ne.s32.totalorder %s214, %s228
      %p230 = scmp.eq.s32.totalorder %s26, 0
      %p231 = por %p229, %p230
      %s233 = sadd.s32 %s232, 1
      %p236 = scmp.eq.s32.totalorder %s20, 1
      %p237 = scmp.ne.s32.totalorder %s232, %s234
      %p238 = scmp.eq.s32.totalorder %s20, 0
      %p239 = por %p237, %p238
      %p240 = scmp.ne.s32.totalorder %s232, %s234
      %p241 = scmp.eq.s32.totalorder %s25, 1
      %p242 = por %p240, %p241
      %p243 = scmp.ne.s32.totalorder %s234, %s235
      %p244 = scmp.eq.s32.totalorder %s25, 0
      %p245 = por %p243, %p244
      %p246 = scmp.ne.s32.totalorder %s234, %s235
      %p247 = scmp.eq.s32.totalorder %s26, 1
      %p248 = por %p246, %p247
      %p250 = scmp.ne.s32.totalorder %s235, %s249
      %p251 = scmp.eq.s32.totalorder %s26, 0
      %p252 = por %p250, %p251
      %p253 = scmp.le.s32.totalorder 1, %s20
      %p254 = scmp.lt.s32.totalorder %s20, 3
      %p255 = pnand %p253, %p254
      %p256 = pneg %p255
      // Predicated region
      $region9: #{tpu_custom_call.1} parent=5 // pred_check
        _
      $region10: #{tpu_custom_call.1} parent=5 // pred_check_branch
        %258 = sbr.rel (%p255) target = $region12
      $region11: #{tpu_custom_call.1} parent=5 // pred_region
        %s259 = ssub.s32 %s20, 1
        // Predicated region
        $region13: #{tpu_custom_call.1} parent=11 // pred_check
          %p260 = pneg %p41
        $region14: #{tpu_custom_call.1} parent=11 // pred_check_branch
          %262 = sbr.rel (%p260) target = $region16
        $region15: #{tpu_custom_call.1} parent=11 // pred_region
          %s264 = ssub.s32 256, 256
          %265 = vsyncadd [#allocation4], %s264
          %s266 = sshll.u32 [#allocation3], 4
          %s267 = int_to_ptr.vmem [resolvable:$true] %s266
          %272 = dma.hbm_to_vmem [thread:$0]  %s0, 256, %s267, [#allocation4], 128, 128, 8
        $region16: #{tpu_custom_call.1} parent=11 // pred_fallthru
          _
        // Predicated region
        $region17: #{tpu_custom_call.1} parent=11 // pred_check
          %p273 = pneg %p140
        $region18: #{tpu_custom_call.1} parent=11 // pred_check_branch
          %275 = sbr.rel (%p273) target = $region20
        $region19: #{tpu_custom_call.1} parent=11 // pred_region
          _
        $region20: #{tpu_custom_call.1} parent=11 // pred_fallthru
          _
        // Predicated region
        $region21: #{tpu_custom_call.1} parent=11 // pred_check
          %p276 = pneg %p161
        $region22: #{tpu_custom_call.1} parent=11 // pred_check_branch
          %278 = sbr.rel (%p276) target = $region24
        $region23: #{tpu_custom_call.1} parent=11 // pred_region
          _
        $region24: #{tpu_custom_call.1} parent=11 // pred_fallthru
          _
        // Predicated region
        $region25: #{tpu_custom_call.1} parent=11 // pred_check
          %p279 = pneg %p182
        $region26: #{tpu_custom_call.1} parent=11 // pred_check_branch
          %281 = sbr.rel (%p279) target = $region28
        $region27: #{tpu_custom_call.1} parent=11 // pred_region
          _
        $region28: #{tpu_custom_call.1} parent=11 // pred_fallthru
          _
        // Predicated region
        $region29: #{tpu_custom_call.1} parent=11 // pred_check
          %p282 = pneg %p203
        $region30: #{tpu_custom_call.1} parent=11 // pred_check_branch
          %284 = sbr.rel (%p282) target = $region32
        $region31: #{tpu_custom_call.1} parent=11 // pred_region
          _
        $region32: #{tpu_custom_call.1} parent=11 // pred_fallthru
          _
        // Predicated region
        $region33: #{tpu_custom_call.1} parent=11 // pred_check
          %p285 = pneg %p224
        $region34: #{tpu_custom_call.1} parent=11 // pred_check_branch
          %287 = sbr.rel (%p285) target = $region36
        $region35: #{tpu_custom_call.1} parent=11 // pred_region
          _
        $region36: #{tpu_custom_call.1} parent=11 // pred_fallthru
          _
      $region12: #{tpu_custom_call.1} parent=5 // pred_fallthru
        _
      %p288 = scmp.lt.s32.totalorder %s20, 2
      // Predicated region
      $region37: #{tpu_custom_call.1} parent=5 // pred_check
        %p289 = pneg %p288
      $region38: #{tpu_custom_call.1} parent=5 // pred_check_branch
        %291 = sbr.rel (%p289) target = $region40
      $region39: #{tpu_custom_call.1} parent=5 // pred_region
        // Predicated region
        $region41: #{tpu_custom_call.1} parent=39 // pred_check
          %p292 = pneg %p61
        $region42: #{tpu_custom_call.1} parent=39 // pred_check_branch
          %294 = sbr.rel (%p292) target = $region44
        $region43: #{tpu_custom_call.1} parent=39 // pred_region
          %p295 = scmp.lt.s32.totalorder %s20, 1
          %s296 = scalar_select %p295, %s20, 1
          %s297 = scalar_lea.vmem %s1, %s296
        $region44: #{tpu_custom_call.1} parent=39 // pred_fallthru
          _
        // Predicated region
        $region45: #{tpu_custom_call.1} parent=39 // pred_check
          %p298 = pneg %p87
        $region46: #{tpu_custom_call.1} parent=39 // pred_check_branch
          %300 = sbr.rel (%p298) target = $region48
        $region47: #{tpu_custom_call.1} parent=39 // pred_region
          %s301 = sand.u32 %s20, 1
          %s302 = scalar_lea.sflag [#allocation7], %s301
          %s303 = sand.u32 %s77, 1
          %s304 = smul.addr %s303, 640
          %s305 = scalar_lea.vmem [#allocation6], %s304
          %s307 = ssub.s32 10240, 10240
          %308 = vsyncadd %s302, %s307
          %s309 = smul.addr %s20, 160
          %s310 = smul.addr %s309, 64
          %s311 = scalar_lea.hbm %s2, %s310
          %s312 = sshll.u32 %s305, 4
          %s313 = int_to_ptr.vmem [resolvable:$true] %s312
          %318 = dma.hbm_to_vmem [thread:$0]  %s311, 10240, %s313, %s302, 640, 640, 40
        $region48: #{tpu_custom_call.1} parent=39 // pred_fallthru
          _
        // Predicated region
        $region49: #{tpu_custom_call.1} parent=39 // pred_check
          %p319 = pneg %p113
        $region50: #{tpu_custom_call.1} parent=39 // pred_check_branch
          %321 = sbr.rel (%p319) target = $region52
        $region51: #{tpu_custom_call.1} parent=39 // pred_region
          %s322 = sand.u32 %s20, 1
          %s323 = scalar_lea.sflag [#allocation7], %s322
          %s324 = sand.u32 %s103, 1
          %s325 = smul.addr %s324, 320
          %s326 = scalar_lea.vmem [#allocation8], %s325
          %s328 = ssub.s32 5120, 5120
          %329 = vsyncadd %s323, %s328
          %s330 = smul.addr %s20, 80
          %s331 = smul.addr %s330, 64
          %s332 = scalar_lea.hbm %s3, %s331
          %s333 = sshll.u32 %s326, 4
          %s334 = int_to_ptr.vmem [resolvable:$true] %s333
          %339 = dma.hbm_to_vmem [thread:$0]  %s332, 5120, %s334, %s323, 64, 64, 4
        $region52: #{tpu_custom_call.1} parent=39 // pred_fallthru
          _
      $region40: #{tpu_custom_call.1} parent=5 // pred_fallthru
        _
      %p340 = scmp.le.s32.totalorder 1, %s20
      %p341 = scmp.lt.s32.totalorder %s20, 3
      %p342 = pnand %p340, %p341
      %p343 = pneg %p342
      // Predicated region
      $region53: #{tpu_custom_call.1} parent=5 // pred_check
        _
      $region54: #{tpu_custom_call.1} parent=5 // pred_check_branch
        %345 = sbr.rel (%p342) target = $region56
      $region55: #{tpu_custom_call.1} parent=5 // pred_region
        %s346 = ssub.s32 %s20, 1
        // Predicated region
        $region57: #{tpu_custom_call.1} parent=55 // pred_check
          %p347 = pneg %p41
        $region58: #{tpu_custom_call.1} parent=55 // pred_check_branch
          %349 = sbr.rel (%p347) target = $region60
        $region59: #{tpu_custom_call.1} parent=55 // pred_region
          %350 = dma.done [#allocation4], 256
        $region60: #{tpu_custom_call.1} parent=55 // pred_fallthru
          _
        %s351 = sand.u32 %s25, 1
        %s352 = scalar_lea.sflag [#allocation7], %s351
        %s353 = sand.u32 %s80, 1
        %s354 = smul.addr %s353, 640
        %s355 = scalar_lea.vmem [#allocation6], %s354
        // Predicated region
        $region61: #{tpu_custom_call.1} parent=55 // pred_check
          %p356 = pneg %p93
        $region62: #{tpu_custom_call.1} parent=55 // pred_check_branch
          %358 = sbr.rel (%p356) target = $region64
        $region63: #{tpu_custom_call.1} parent=55 // pred_region
          %359 = dma.done %s352, 10240
        $region64: #{tpu_custom_call.1} parent=55 // pred_fallthru
          _
        %s360 = sand.u32 %s25, 1
        %s361 = scalar_lea.sflag [#allocation7], %s360
        %s362 = sand.u32 %s106, 1
        %s363 = smul.addr %s362, 320
        %s364 = scalar_lea.vmem [#allocation8], %s363
        // Predicated region
        $region65: #{tpu_custom_call.1} parent=55 // pred_check
          %p365 = pneg %p119
        $region66: #{tpu_custom_call.1} parent=55 // pred_check_branch
          %367 = sbr.rel (%p365) target = $region68
        $region67: #{tpu_custom_call.1} parent=55 // pred_region
          %368 = dma.done %s361, 5120
        $region68: #{tpu_custom_call.1} parent=55 // pred_fallthru
          _
        %p369 = pneg %p41
        %p370 = pneg %p38
        %p371 = scmp.lt.s32.totalorder %s25, 1
        %s372 = scalar_select %p371, %s25, 1
        %s373 = scalar_lea.vmem %s1, %s372
        %p374 = pneg %p67
        %p375 = pneg %p64
        %s376 = sand.u32 %s25, 1
        %s377 = scalar_lea.sflag [#allocation7], %s376
        %s378 = sand.u32 %s80, 1
        %s379 = smul.addr %s378, 640
        %s380 = scalar_lea.vmem [#allocation6], %s379
        %p381 = pneg %p93
        %p382 = pneg %p90
        %s383 = sand.u32 %s25, 1
        %s384 = scalar_lea.sflag [#allocation7], %s383
        %s385 = sand.u32 %s106, 1
        %s386 = smul.addr %s385, 320
        %s387 = scalar_lea.vmem [#allocation8], %s386
        %p388 = pneg %p119
        %p389 = pneg %p116
        %p390 = pneg %p140
        %p391 = pneg %p137
        %p392 = pneg %p161
        %p393 = pneg %p158
        %p394 = pneg %p182
        %p395 = pneg %p179
        %p396 = pneg %p203
        %p397 = pneg %p200
        %p398 = pneg %p224
        %p399 = pneg %p221
        %p400 = pneg %p245
        %p401 = pneg %p242
        %p402 = scmp.lt.s32.totalorder %s25, 1
        %s403 = scalar_select %p402, %s25, 1
        %s404 = scalar_lea.vmem %s1, %s403
        %p406 = scmp.eq.s32.totalorder %s25, 0
        // Predicated region
        $region69: #{tpu_custom_call.1} parent=55 // pred_check
          %p407 = pneg %p406
        $region70: #{tpu_custom_call.1} parent=55 // pred_check_branch
          %409 = sbr.rel (%p407) target = $region72
        $region71: #{tpu_custom_call.1} parent=55 // pred_region
          %v410 = vld [vmem:[#allocation3] sm:$0xff]
          %v411 = vld [vmem:[#allocation3 + $0x8] sm:$0xff]
          %412 = vst [vmem:[#allocation2] sm:$0xff] %v410
          %413 = vst [vmem:[#allocation2 + $0x8] sm:$0xff] %v411
        $region72: #{tpu_custom_call.1} parent=55 // pred_fallthru
          _
        %v414 = vld [vmem:[#allocation2] sm:$0xff]
        %v415 = vld [vmem:[#allocation2 + $0x8] sm:$0xff]
        %416 = vadd.xlane.f32.xlu0 %v414
        %v417 = vpop.xlane.xlu0 %416
        %418 = vadd.xlane.f32.xlu0 %v415
        %v419 = vpop.xlane.xlu0 %418
        %v420 = vrcp.pop 128.0
        %v421 = vmul.f32 %v417, %v420
        %v422 = vmul.f32 %v419, %v420
        %v423 = vsub.f32 %v414, %v421
        %v424 = vsub.f32 %v415, %v422
        %v425 = vmul.f32 %v423, %v423
        %v426 = vmul.f32 %v424, %v424
        %427 = vadd.xlane.f32.xlu0 %v425
        %v428 = vpop.xlane.xlu0 %427
        %429 = vadd.xlane.f32.xlu0 %v426
        %v430 = vpop.xlane.xlu0 %429
        %v431 = vmul.f32 %v428, %v420
        %v432 = vmul.f32 %v430, %v420
        %v433 = vadd.f32 %v431, 1e-05
        %v434 = vadd.f32 %v432, 1e-05
        %v435 = vrsqrt.pop %v433
        %v436 = vrsqrt.pop %v434
        %v437 = vmul.f32 %v423, %v435
        %v438 = vmul.f32 %v424, %v436
        %v439 = vld [vmem:[%s404] sm:$0x1]
        %v441 = vlaneseq
        %v442 = vshrl.u32 %v441, 7
        %v443 = vsub.s32 0, %v442
        %v444 = vrot.slane %v439, %v443
        %v446 = vmul.f32 %v437, %v444
        %v447 = vmul.f32 %v438, %v444
        %v448 = vpack.c.bf16 %v447, %v446
        %v449 = vld [vmem:[%s355] sm:$0xff]
        %v450 = vld [vmem:[%s355 + $0x8] sm:$0xff]
        %v451 = vld [vmem:[%s355 + $0x10] sm:$0xff]
        %v452 = vld [vmem:[%s355 + $0x18] sm:$0xff]
        %v453 = vld [vmem:[%s355 + $0x20] sm:$0xff]
        %v454 = vld [vmem:[%s355 + $0x28] sm:$0xff]
        %v455 = vld [vmem:[%s355 + $0x30] sm:$0xff]
        %v456 = vld [vmem:[%s355 + $0x38] sm:$0xff]
        %v457 = vld [vmem:[%s355 + $0x40] sm:$0xff]
        %v458 = vld [vmem:[%s355 + $0x48] sm:$0xff]
        %v459 = vld [vmem:[%s355 + $0x50] sm:$0xff]
        %v460 = vld [vmem:[%s355 + $0x58] sm:$0xff]
        %v461 = vld [vmem:[%s355 + $0x60] sm:$0xff]
        %v462 = vld [vmem:[%s355 + $0x68] sm:$0xff]
        %v463 = vld [vmem:[%s355 + $0x70] sm:$0xff]
        %v464 = vld [vmem:[%s355 + $0x78] sm:$0xff]
        %v465 = vld [vmem:[%s355 + $0x80] sm:$0xff]
        %v466 = vld [vmem:[%s355 + $0x88] sm:$0xff]
        %v467 = vld [vmem:[%s355 + $0x90] sm:$0xff]
        %v468 = vld [vmem:[%s355 + $0x98] sm:$0xff]
        %v469 = vld [vmem:[%s355 + $0xa0] sm:$0xff]
        %v470 = vld [vmem:[%s355 + $0xa8] sm:$0xff]
        %v471 = vld [vmem:[%s355 + $0xb0] sm:$0xff]
        %v472 = vld [vmem:[%s355 + $0xb8] sm:$0xff]
        %v473 = vld [vmem:[%s355 + $0xc0] sm:$0xff]
        %v474 = vld [vmem:[%s355 + $0xc8] sm:$0xff]
        %v475 = vld [vmem:[%s355 + $0xd0] sm:$0xff]
        %v476 = vld [vmem:[%s355 + $0xd8] sm:$0xff]
        %v477 = vld [vmem:[%s355 + $0xe0] sm:$0xff]
        %v478 = vld [vmem:[%s355 + $0xe8] sm:$0xff]
        %v479 = vld [vmem:[%s355 + $0xf0] sm:$0xff]
        %v480 = vld [vmem:[%s355 + $0xf8] sm:$0xff]
        %v481 = vld [vmem:[%s355 + $0x100] sm:$0xff]
        %v482 = vld [vmem:[%s355 + $0x108] sm:$0xff]
        %v483 = vld [vmem:[%s355 + $0x110] sm:$0xff]
        %v484 = vld [vmem:[%s355 + $0x118] sm:$0xff]
        %v485 = vld [vmem:[%s355 + $0x120] sm:$0xff]
        %v486 = vld [vmem:[%s355 + $0x128] sm:$0xff]
        %v487 = vld [vmem:[%s355 + $0x130] sm:$0xff]
        %v488 = vld [vmem:[%s355 + $0x138] sm:$0xff]
        %v489 = vld [vmem:[%s355 + $0x140] sm:$0xff]
        %v490 = vld [vmem:[%s355 + $0x148] sm:$0xff]
        %v491 = vld [vmem:[%s355 + $0x150] sm:$0xff]
        %v492 = vld [vmem:[%s355 + $0x158] sm:$0xff]
        %v493 = vld [vmem:[%s355 + $0x160] sm:$0xff]
        %v494 = vld [vmem:[%s355 + $0x168] sm:$0xff]
        %v495 = vld [vmem:[%s355 + $0x170] sm:$0xff]
        %v496 = vld [vmem:[%s355 + $0x178] sm:$0xff]
        %v497 = vld [vmem:[%s355 + $0x180] sm:$0xff]
        %v498 = vld [vmem:[%s355 + $0x188] sm:$0xff]
        %v499 = vld [vmem:[%s355 + $0x190] sm:$0xff]
        %v500 = vld [vmem:[%s355 + $0x198] sm:$0xff]
        %v501 = vld [vmem:[%s355 + $0x1a0] sm:$0xff]
        %v502 = vld [vmem:[%s355 + $0x1a8] sm:$0xff]
        %v503 = vld [vmem:[%s355 + $0x1b0] sm:$0xff]
        %v504 = vld [vmem:[%s355 + $0x1b8] sm:$0xff]
        %v505 = vld [vmem:[%s355 + $0x1c0] sm:$0xff]
        %v506 = vld [vmem:[%s355 + $0x1c8] sm:$0xff]
        %v507 = vld [vmem:[%s355 + $0x1d0] sm:$0xff]
        %v508 = vld [vmem:[%s355 + $0x1d8] sm:$0xff]
        %v509 = vld [vmem:[%s355 + $0x1e0] sm:$0xff]
        %v510 = vld [vmem:[%s355 + $0x1e8] sm:$0xff]
        %v511 = vld [vmem:[%s355 + $0x1f0] sm:$0xff]
        %v512 = vld [vmem:[%s355 + $0x1f8] sm:$0xff]
        %v513 = vld [vmem:[%s355 + $0x200] sm:$0xff]
        %v514 = vld [vmem:[%s355 + $0x208] sm:$0xff]
        %v515 = vld [vmem:[%s355 + $0x210] sm:$0xff]
        %v516 = vld [vmem:[%s355 + $0x218] sm:$0xff]
        %v517 = vld [vmem:[%s355 + $0x220] sm:$0xff]
        %v518 = vld [vmem:[%s355 + $0x228] sm:$0xff]
        %v519 = vld [vmem:[%s355 + $0x230] sm:$0xff]
        %v520 = vld [vmem:[%s355 + $0x238] sm:$0xff]
        %v521 = vld [vmem:[%s355 + $0x240] sm:$0xff]
        %v522 = vld [vmem:[%s355 + $0x248] sm:$0xff]
        %v523 = vld [vmem:[%s355 + $0x250] sm:$0xff]
        %v524 = vld [vmem:[%s355 + $0x258] sm:$0xff]
        %v525 = vld [vmem:[%s355 + $0x260] sm:$0xff]
        %v526 = vld [vmem:[%s355 + $0x268] sm:$0xff]
        %v527 = vld [vmem:[%s355 + $0x270] sm:$0xff]
        %v528 = vld [vmem:[%s355 + $0x278] sm:$0xff]
        %v609 = vunpack.c.l.b16 %v449
        %v610 = vunpack.c.h.b16 %v449
        %v611 = vunpack.c.l.b16 %v450
        %v612 = vunpack.c.h.b16 %v450
        %v613 = vunpack.c.l.b16 %v451
        %v614 = vunpack.c.h.b16 %v451
        %v615 = vunpack.c.l.b16 %v452
        %v616 = vunpack.c.h.b16 %v452
        %v617 = vunpack.c.l.b16 %v453
        %v618 = vunpack.c.h.b16 %v453
        %v619 = vunpack.c.l.b16 %v454
        %v620 = vunpack.c.h.b16 %v454
        %v621 = vunpack.c.l.b16 %v455
        %v622 = vunpack.c.h.b16 %v455
        %v623 = vunpack.c.l.b16 %v456
        %v624 = vunpack.c.h.b16 %v456
        %v625 = vunpack.c.l.b16 %v457
        %v626 = vunpack.c.h.b16 %v457
        %v627 = vunpack.c.l.b16 %v458
        %v628 = vunpack.c.h.b16 %v458
        %v629 = vunpack.c.l.b16 %v459
        %v630 = vunpack.c.h.b16 %v459
        %v631 = vunpack.c.l.b16 %v460
        %v632 = vunpack.c.h.b16 %v460
        %v633 = vunpack.c.l.b16 %v461
        %v634 = vunpack.c.h.b16 %v461
        %v635 = vunpack.c.l.b16 %v462
        %v636 = vunpack.c.h.b16 %v462
        %v637 = vunpack.c.l.b16 %v463
        %v638 = vunpack.c.h.b16 %v463
        %v639 = vunpack.c.l.b16 %v464
        %v640 = vunpack.c.h.b16 %v464
        %v641 = vunpack.c.l.b16 %v465
        %v642 = vunpack.c.h.b16 %v465
        %v643 = vunpack.c.l.b16 %v466
        %v644 = vunpack.c.h.b16 %v466
        %v645 = vunpack.c.l.b16 %v467
        %v646 = vunpack.c.h.b16 %v467
        %v647 = vunpack.c.l.b16 %v468
        %v648 = vunpack.c.h.b16 %v468
        %v649 = vunpack.c.l.b16 %v469
        %v650 = vunpack.c.h.b16 %v469
        %v651 = vunpack.c.l.b16 %v470
        %v652 = vunpack.c.h.b16 %v470
        %v653 = vunpack.c.l.b16 %v471
        %v654 = vunpack.c.h.b16 %v471
        %v655 = vunpack.c.l.b16 %v472
        %v656 = vunpack.c.h.b16 %v472
        %v657 = vunpack.c.l.b16 %v473
        %v658 = vunpack.c.h.b16 %v473
        %v659 = vunpack.c.l.b16 %v474
        %v660 = vunpack.c.h.b16 %v474
        %v661 = vunpack.c.l.b16 %v475
        %v662 = vunpack.c.h.b16 %v475
        %v663 = vunpack.c.l.b16 %v476
        %v664 = vunpack.c.h.b16 %v476
        %v665 = vunpack.c.l.b16 %v477
        %v666 = vunpack.c.h.b16 %v477
        %v667 = vunpack.c.l.b16 %v478
        %v668 = vunpack.c.h.b16 %v478
        %v669 = vunpack.c.l.b16 %v479
        %v670 = vunpack.c.h.b16 %v479
        %v671 = vunpack.c.l.b16 %v480
        %v672 = vunpack.c.h.b16 %v480
        %v673 = vunpack.c.l.b16 %v481
        %v674 = vunpack.c.h.b16 %v481
        %v675 = vunpack.c.l.b16 %v482
        %v676 = vunpack.c.h.b16 %v482
        %v677 = vunpack.c.l.b16 %v483
        %v678 = vunpack.c.h.b16 %v483
        %v679 = vunpack.c.l.b16 %v484
        %v680 = vunpack.c.h.b16 %v484
        %v681 = vunpack.c.l.b16 %v485
        %v682 = vunpack.c.h.b16 %v485
        %v683 = vunpack.c.l.b16 %v486
        %v684 = vunpack.c.h.b16 %v486
        %v685 = vunpack.c.l.b16 %v487
        %v686 = vunpack.c.h.b16 %v487
        %v687 = vunpack.c.l.b16 %v488
        %v688 = vunpack.c.h.b16 %v488
        %v689 = vunpack.c.l.b16 %v489
        %v690 = vunpack.c.h.b16 %v489
        %v691 = vunpack.c.l.b16 %v490
        %v692 = vunpack.c.h.b16 %v490
        %v693 = vunpack.c.l.b16 %v491
        %v694 = vunpack.c.h.b16 %v491
        %v695 = vunpack.c.l.b16 %v492
        %v696 = vunpack.c.h.b16 %v492
        %v697 = vunpack.c.l.b16 %v493
        %v698 = vunpack.c.h.b16 %v493
        %v699 = vunpack.c.l.b16 %v494
        %v700 = vunpack.c.h.b16 %v494
        %v701 = vunpack.c.l.b16 %v495
        %v702 = vunpack.c.h.b16 %v495
        %v703 = vunpack.c.l.b16 %v496
        %v704 = vunpack.c.h.b16 %v496
        %v705 = vunpack.c.l.b16 %v497
        %v706 = vunpack.c.h.b16 %v497
        %v707 = vunpack.c.l.b16 %v498
        %v708 = vunpack.c.h.b16 %v498
        %v709 = vunpack.c.l.b16 %v499
        %v710 = vunpack.c.h.b16 %v499
        %v711 = vunpack.c.l.b16 %v500
        %v712 = vunpack.c.h.b16 %v500
        %v713 = vunpack.c.l.b16 %v501
        %v714 = vunpack.c.h.b16 %v501
        %v715 = vunpack.c.l.b16 %v502
        %v716 = vunpack.c.h.b16 %v502
        %v717 = vunpack.c.l.b16 %v503
        %v718 = vunpack.c.h.b16 %v503
        %v719 = vunpack.c.l.b16 %v504
        %v720 = vunpack.c.h.b16 %v504
        %v721 = vunpack.c.l.b16 %v505
        %v722 = vunpack.c.h.b16 %v505
        %v723 = vunpack.c.l.b16 %v506
        %v724 = vunpack.c.h.b16 %v506
        %v725 = vunpack.c.l.b16 %v507
        %v726 = vunpack.c.h.b16 %v507
        %v727 = vunpack.c.l.b16 %v508
        %v728 = vunpack.c.h.b16 %v508
        %v729 = vunpack.c.l.b16 %v509
        %v730 = vunpack.c.h.b16 %v509
        %v731 = vunpack.c.l.b16 %v510
        %v732 = vunpack.c.h.b16 %v510
        %v733 = vunpack.c.l.b16 %v511
        %v734 = vunpack.c.h.b16 %v511
        %v735 = vunpack.c.l.b16 %v512
        %v736 = vunpack.c.h.b16 %v512
        %v737 = vunpack.c.l.b16 %v513
        %v738 = vunpack.c.h.b16 %v513
        %v739 = vunpack.c.l.b16 %v514
        %v740 = vunpack.c.h.b16 %v514
        %v741 = vunpack.c.l.b16 %v515
        %v742 = vunpack.c.h.b16 %v515
        %v743 = vunpack.c.l.b16 %v516
        %v744 = vunpack.c.h.b16 %v516
        %v745 = vunpack.c.l.b16 %v517
        %v746 = vunpack.c.h.b16 %v517
        %v747 = vunpack.c.l.b16 %v518
        %v748 = vunpack.c.h.b16 %v518
        %v749 = vunpack.c.l.b16 %v519
        %v750 = vunpack.c.h.b16 %v519
        %v751 = vunpack.c.l.b16 %v520
        %v752 = vunpack.c.h.b16 %v520
        %v753 = vunpack.c.l.b16 %v521
        %v754 = vunpack.c.h.b16 %v521
        %v755 = vunpack.c.l.b16 %v522
        %v756 = vunpack.c.h.b16 %v522
        %v757 = vunpack.c.l.b16 %v523
        %v758 = vunpack.c.h.b16 %v523
        %v759 = vunpack.c.l.b16 %v524
        %v760 = vunpack.c.h.b16 %v524
        %v761 = vunpack.c.l.b16 %v525
        %v762 = vunpack.c.h.b16 %v525
        %v763 = vunpack.c.l.b16 %v526
        %v764 = vunpack.c.h.b16 %v526
        %v765 = vunpack.c.l.b16 %v527
        %v766 = vunpack.c.h.b16 %v527
        %v767 = vunpack.c.l.b16 %v528
        %v768 = vunpack.c.h.b16 %v528
        %v769 = vpack.c.b16 %v619, %v609
        %v770 = vpack.c.b16 %v620, %v610
        %v771 = vpack.c.b16 %v621, %v611
        %v772 = vpack.c.b16 %v622, %v612
        %v773 = vpack.c.b16 %v623, %v613
        %v774 = vpack.c.b16 %v624, %v614
        %v775 = vpack.c.b16 %v625, %v615
        %v776 = vpack.c.b16 %v626, %v616
        %v777 = vpack.c.b16 %v627, %v617
        %v778 = vpack.c.b16 %v628, %v618
        %v779 = vpack.c.b16 %v639, %v629
        %v780 = vpack.c.b16 %v640, %v630
        %v781 = vpack.c.b16 %v641, %v631
        %v782 = vpack.c.b16 %v642, %v632
        %v783 = vpack.c.b16 %v643, %v633
        %v784 = vpack.c.b16 %v644, %v634
        %v785 = vpack.c.b16 %v645, %v635
        %v786 = vpack.c.b16 %v646, %v636
        %v787 = vpack.c.b16 %v647, %v637
        %v788 = vpack.c.b16 %v648, %v638
        %v789 = vpack.c.b16 %v659, %v649
        %v790 = vpack.c.b16 %v660, %v650
        %v791 = vpack.c.b16 %v661, %v651
        %v792 = vpack.c.b16 %v662, %v652
        %v793 = vpack.c.b16 %v663, %v653
        %v794 = vpack.c.b16 %v664, %v654
        %v795 = vpack.c.b16 %v665, %v655
        %v796 = vpack.c.b16 %v666, %v656
        %v797 = vpack.c.b16 %v667, %v657
        %v798 = vpack.c.b16 %v668, %v658
        %v799 = vpack.c.b16 %v679, %v669
        %v800 = vpack.c.b16 %v680, %v670
        %v801 = vpack.c.b16 %v681, %v671
        %v802 = vpack.c.b16 %v682, %v672
        %v803 = vpack.c.b16 %v683, %v673
        %v804 = vpack.c.b16 %v684, %v674
        %v805 = vpack.c.b16 %v685, %v675
        %v806 = vpack.c.b16 %v686, %v676
        %v807 = vpack.c.b16 %v687, %v677
        %v808 = vpack.c.b16 %v688, %v678
        %v809 = vpack.c.b16 %v699, %v689
        %v810 = vpack.c.b16 %v700, %v690
        %v811 = vpack.c.b16 %v701, %v691
        %v812 = vpack.c.b16 %v702, %v692
        %v813 = vpack.c.b16 %v703, %v693
        %v814 = vpack.c.b16 %v704, %v694
        %v815 = vpack.c.b16 %v705, %v695
        %v816 = vpack.c.b16 %v706, %v696
        %v817 = vpack.c.b16 %v707, %v697
        %v818 = vpack.c.b16 %v708, %v698
        %v819 = vpack.c.b16 %v719, %v709
        %v820 = vpack.c.b16 %v720, %v710
        %v821 = vpack.c.b16 %v721, %v711
        %v822 = vpack.c.b16 %v722, %v712
        %v823 = vpack.c.b16 %v723, %v713
        %v824 = vpack.c.b16 %v724, %v714
        %v825 = vpack.c.b16 %v725, %v715
        %v826 = vpack.c.b16 %v726, %v716
        %v827 = vpack.c.b16 %v727, %v717
        %v828 = vpack.c.b16 %v728, %v718
        %v829 = vpack.c.b16 %v739, %v729
        %v830 = vpack.c.b16 %v740, %v730
        %v831 = vpack.c.b16 %v741, %v731
        %v832 = vpack.c.b16 %v742, %v732
        %v833 = vpack.c.b16 %v743, %v733
        %v834 = vpack.c.b16 %v744, %v734
        %v835 = vpack.c.b16 %v745, %v735
        %v836 = vpack.c.b16 %v746, %v736
        %v837 = vpack.c.b16 %v747, %v737
        %v838 = vpack.c.b16 %v748, %v738
        %v839 = vpack.c.b16 %v759, %v749
        %v840 = vpack.c.b16 %v760, %v750
        %v841 = vpack.c.b16 %v761, %v751
        %v842 = vpack.c.b16 %v762, %v752
        %v843 = vpack.c.b16 %v763, %v753
        %v844 = vpack.c.b16 %v764, %v754
        %v845 = vpack.c.b16 %v765, %v755
        %v846 = vpack.c.b16 %v766, %v756
        %v847 = vpack.c.b16 %v767, %v757
        %v848 = vpack.c.b16 %v768, %v758
        %929 = vmatprep.subr.bf16.mxu0 %v770
        %930 = vmatpush1.bf16.msra.mxu0 %v769
        %931 = vmatprep.subr.bf16.mxu0 %v780
        %932 = vmatpush1.bf16.msra.mxu0 %v779
        %933 = vmatprep.subr.bf16.mxu0 %v790
        %934 = vmatpush1.bf16.msra.mxu0 %v789
        %935 = vmatprep.subr.bf16.mxu0 %v800
        %936 = vmatpush1.bf16.msra.mxu0 %v799
        %937 = vmatprep.subr.bf16.mxu0 %v810
        %938 = vmatpush1.bf16.msra.mxu0 %v809
        %939 = vmatprep.subr.bf16.mxu0 %v820
        %940 = vmatpush1.bf16.msra.mxu0 %v819
        %941 = vmatprep.subr.bf16.mxu0 %v830
        %942 = vmatpush1.bf16.msra.mxu0 %v829
        %943 = vmatprep.subr.bf16.mxu0 %v840
        %944 = vmatpush1.bf16.msra.mxu0 %v839
        %945 = vmatprep.subr.bf16.mxu0 0
        %946 = vmatpush1.bf16.msra.mxu0 0
        %947 = vmatprep.subr.bf16.mxu0 0
        %948 = vmatpush1.bf16.msra.mxu0 0
        %949 = vmatprep.subr.bf16.mxu0 0
        %950 = vmatpush1.bf16.msra.mxu0 0
        %951 = vmatprep.subr.bf16.mxu0 0
        %952 = vmatpush1.bf16.msra.mxu0 0
        %953 = vmatprep.subr.bf16.mxu0 0
        %954 = vmatpush1.bf16.msra.mxu0 0
        %955 = vmatprep.subr.bf16.mxu0 0
        %956 = vmatpush1.bf16.msra.mxu0 0
        %957 = vmatprep.subr.bf16.mxu0 0
        %958 = vmatpush1.bf16.msra.mxu0 0
        %959 = vmatprep.subr.bf16.mxu0 0
        %960 = vmatpush1.bf16.msra.mxu0 0
        %961 = vmatprep.mubr.bf16.mxu0 0
        %962 = vmatmul.mubr.bf16.gmra.mrb[0].mxu0 %v448
        %v963 = vpop.f32.mrb[0].mxu0
        %v964 = vadd.f32 0.0, %v963
        %v965 = vpop.f32.mrb[0].mxu0
        %v966 = vadd.f32 0.0, %v965
        %v967 = vpop.f32.mrb[0].mxu0
        %v968 = vadd.f32 0.0, %v967
        %v969 = vpop.f32.mrb[0].mxu0
        %v970 = vadd.f32 0.0, %v969
        %971 = vdwg.mxu0
        %972 = vmatprep.subr.bf16.mxu0 %v772
        %973 = vmatpush1.bf16.msra.mxu0 %v771
        %974 = vmatprep.subr.bf16.mxu0 %v782
        %975 = vmatpush1.bf16.msra.mxu0 %v781
        %976 = vmatprep.subr.bf16.mxu0 %v792
        %977 = vmatpush1.bf16.msra.mxu0 %v791
        %978 = vmatprep.subr.bf16.mxu0 %v802
        %979 = vmatpush1.bf16.msra.mxu0 %v801
        %980 = vmatprep.subr.bf16.mxu0 %v812
        %981 = vmatpush1.bf16.msra.mxu0 %v811
        %982 = vmatprep.subr.bf16.mxu0 %v822
        %983 = vmatpush1.bf16.msra.mxu0 %v821
        %984 = vmatprep.subr.bf16.mxu0 %v832
        %985 = vmatpush1.bf16.msra.mxu0 %v831
        %986 = vmatprep.subr.bf16.mxu0 %v842
        %987 = vmatpush1.bf16.msra.mxu0 %v841
        %988 = vmatprep.subr.bf16.mxu0 0
        %989 = vmatpush1.bf16.msra.mxu0 0
        %990 = vmatprep.subr.bf16.mxu0 0
        %991 = vmatpush1.bf16.msra.mxu0 0
        %992 = vmatprep.subr.bf16.mxu0 0
        %993 = vmatpush1.bf16.msra.mxu0 0
        %994 = vmatprep.subr.bf16.mxu0 0
        %995 = vmatpush1.bf16.msra.mxu0 0
        %996 = vmatprep.subr.bf16.mxu0 0
        %997 = vmatpush1.bf16.msra.mxu0 0
        %998 = vmatprep.subr.bf16.mxu0 0
        %999 = vmatpush1.bf16.msra.mxu0 0
        %1000 = vmatprep.subr.bf16.mxu0 0
        %1001 = vmatpush1.bf16.msra.mxu0 0
        %1002 = vmatprep.subr.bf16.mxu0 0
        %1003 = vmatpush1.bf16.msra.mxu0 0
        %1004 = vmatprep.mubr.bf16.mxu0 0
        %1005 = vmatmul.mubr.bf16.gmra.mrb[0].mxu0 %v448
        %v1006 = vpop.f32.mrb[0].mxu0
        %v1007 = vadd.f32 0.0, %v1006
        %v1008 = vpop.f32.mrb[0].mxu0
        %v1009 = vadd.f32 0.0, %v1008
        %v1010 = vpop.f32.mrb[0].mxu0
        %v1011 = vadd.f32 0.0, %v1010
        %v1012 = vpop.f32.mrb[0].mxu0
        %v1013 = vadd.f32 0.0, %v1012
        %1014 = vdwg.mxu0
        %1015 = vmatprep.subr.bf16.mxu0 %v774
        %1016 = vmatpush1.bf16.msra.mxu0 %v773
        %1017 = vmatprep.subr.bf16.mxu0 %v784
        %1018 = vmatpush1.bf16.msra.mxu0 %v783
        %1019 = vmatprep.subr.bf16.mxu0 %v794
        %1020 = vmatpush1.bf16.msra.mxu0 %v793
        %1021 = vmatprep.subr.bf16.mxu0 %v804
        %1022 = vmatpush1.bf16.msra.mxu0 %v803
        %1023 = vmatprep.subr.bf16.mxu0 %v814
        %1024 = vmatpush1.bf16.msra.mxu0 %v813
        %1025 = vmatprep.subr.bf16.mxu0 %v824
        %1026 = vmatpush1.bf16.msra.mxu0 %v823
        %1027 = vmatprep.subr.bf16.mxu0 %v834
        %1028 = vmatpush1.bf16.msra.mxu0 %v833
        %1029 = vmatprep.subr.bf16.mxu0 %v844
        %1030 = vmatpush1.bf16.msra.mxu0 %v843
        %1031 = vmatprep.subr.bf16.mxu0 0
        %1032 = vmatpush1.bf16.msra.mxu0 0
        %1033 = vmatprep.subr.bf16.mxu0 0
        %1034 = vmatpush1.bf16.msra.mxu0 0
        %1035 = vmatprep.subr.bf16.mxu0 0
        %1036 = vmatpush1.bf16.msra.mxu0 0
        %1037 = vmatprep.subr.bf16.mxu0 0
        %1038 = vmatpush1.bf16.msra.mxu0 0
        %1039 = vmatprep.subr.bf16.mxu0 0
        %1040 = vmatpush1.bf16.msra.mxu0 0
        %1041 = vmatprep.subr.bf16.mxu0 0
        %1042 = vmatpush1.bf16.msra.mxu0 0
        %1043 = vmatprep.subr.bf16.mxu0 0
        %1044 = vmatpush1.bf16.msra.mxu0 0
        %1045 = vmatprep.subr.bf16.mxu0 0
        %1046 = vmatpush1.bf16.msra.mxu0 0
        %1047 = vmatprep.mubr.bf16.mxu0 0
        %1048 = vmatmul.mubr.bf16.gmra.mrb[0].mxu0 %v448
        %v1049 = vpop.f32.mrb[0].mxu0
        %v1050 = vadd.f32 0.0, %v1049
        %v1051 = vpop.f32.mrb[0].mxu0
        %v1052 = vadd.f32 0.0, %v1051
        %v1053 = vpop.f32.mrb[0].mxu0
        %v1054 = vadd.f32 0.0, %v1053
        %v1055 = vpop.f32.mrb[0].mxu0
        %v1056 = vadd.f32 0.0, %v1055
        %1057 = vdwg.mxu0
        %1058 = vmatprep.subr.bf16.mxu0 %v776
        %1059 = vmatpush1.bf16.msra.mxu0 %v775
        %1060 = vmatprep.subr.bf16.mxu0 %v786
        %1061 = vmatpush1.bf16.msra.mxu0 %v785
        %1062 = vmatprep.subr.bf16.mxu0 %v796
        %1063 = vmatpush1.bf16.msra.mxu0 %v795
        %1064 = vmatprep.subr.bf16.mxu0 %v806
        %1065 = vmatpush1.bf16.msra.mxu0 %v805
        %1066 = vmatprep.subr.bf16.mxu0 %v816
        %1067 = vmatpush1.bf16.msra.mxu0 %v815
        %1068 = vmatprep.subr.bf16.mxu0 %v826
        %1069 = vmatpush1.bf16.msra.mxu0 %v825
        %1070 = vmatprep.subr.bf16.mxu0 %v836
        %1071 = vmatpush1.bf16.msra.mxu0 %v835
        %1072 = vmatprep.subr.bf16.mxu0 %v846
        %1073 = vmatpush1.bf16.msra.mxu0 %v845
        %1074 = vmatprep.subr.bf16.mxu0 0
        %1075 = vmatpush1.bf16.msra.mxu0 0
        %1076 = vmatprep.subr.bf16.mxu0 0
        %1077 = vmatpush1.bf16.msra.mxu0 0
        %1078 = vmatprep.subr.bf16.mxu0 0
        %1079 = vmatpush1.bf16.msra.mxu0 0
        %1080 = vmatprep.subr.bf16.mxu0 0
        %1081 = vmatpush1.bf16.msra.mxu0 0
        %1082 = vmatprep.subr.bf16.mxu0 0
        %1083 = vmatpush1.bf16.msra.mxu0 0
        %1084 = vmatprep.subr.bf16.mxu0 0
        %1085 = vmatpush1.bf16.msra.mxu0 0
        %1086 = vmatprep.subr.bf16.mxu0 0
        %1087 = vmatpush1.bf16.msra.mxu0 0
        %1088 = vmatprep.subr.bf16.mxu0 0
        %1089 = vmatpush1.bf16.msra.mxu0 0
        %1090 = vmatprep.mubr.bf16.mxu0 0
        %1091 = vmatmul.mubr.bf16.gmra.mrb[0].mxu0 %v448
        %v1092 = vpop.f32.mrb[0].mxu0
        %v1093 = vadd.f32 0.0, %v1092
        %v1094 = vpop.f32.mrb[0].mxu0
        %v1095 = vadd.f32 0.0, %v1094
        %v1096 = vpop.f32.mrb[0].mxu0
        %v1097 = vadd.f32 0.0, %v1096
        %v1098 = vpop.f32.mrb[0].mxu0
        %v1099 = vadd.f32 0.0, %v1098
        %1100 = vdwg.mxu0
        %1101 = vmatprep.subr.bf16.mxu0 %v778
        %1102 = vmatpush1.bf16.msra.mxu0 %v777
        %1103 = vmatprep.subr.bf16.mxu0 %v788
        %1104 = vmatpush1.bf16.msra.mxu0 %v787
        %1105 = vmatprep.subr.bf16.mxu0 %v798
        %1106 = vmatpush1.bf16.msra.mxu0 %v797
        %1107 = vmatprep.subr.bf16.mxu0 %v808
        %1108 = vmatpush1.bf16.msra.mxu0 %v807
        %1109 = vmatprep.subr.bf16.mxu0 %v818
        %1110 = vmatpush1.bf16.msra.mxu0 %v817
        %1111 = vmatprep.subr.bf16.mxu0 %v828
        %1112 = vmatpush1.bf16.msra.mxu0 %v827
        %1113 = vmatprep.subr.bf16.mxu0 %v838
        %1114 = vmatpush1.bf16.msra.mxu0 %v837
        %1115 = vmatprep.subr.bf16.mxu0 %v848
        %1116 = vmatpush1.bf16.msra.mxu0 %v847
        %1117 = vmatprep.subr.bf16.mxu0 0
        %1118 = vmatpush1.bf16.msra.mxu0 0
        %1119 = vmatprep.subr.bf16.mxu0 0
        %1120 = vmatpush1.bf16.msra.mxu0 0
        %1121 = vmatprep.subr.bf16.mxu0 0
        %1122 = vmatpush1.bf16.msra.mxu0 0
        %1123 = vmatprep.subr.bf16.mxu0 0
        %1124 = vmatpush1.bf16.msra.mxu0 0
        %1125 = vmatprep.subr.bf16.mxu0 0
        %1126 = vmatpush1.bf16.msra.mxu0 0
        %1127 = vmatprep.subr.bf16.mxu0 0
        %1128 = vmatpush1.bf16.msra.mxu0 0
        %1129 = vmatprep.subr.bf16.mxu0 0
        %1130 = vmatpush1.bf16.msra.mxu0 0
        %1131 = vmatprep.subr.bf16.mxu0 0
        %1132 = vmatpush1.bf16.msra.mxu0 0
        %1133 = vmatprep.mubr.bf16.mxu0 0
        %1134 = vmatmul.mubr.bf16.gmra.mrb[0].mxu0 %v448
        %v1135 = vpop.f32.mrb[0].mxu0
        %v1136 = vadd.f32 0.0, %v1135
        %v1137 = vpop.f32.mrb[0].mxu0
        %v1138 = vadd.f32 0.0, %v1137
        %v1139 = vpop.f32.mrb[0].mxu0
        %v1140 = vadd.f32 0.0, %v1139
        %v1141 = vpop.f32.mrb[0].mxu0
        %v1142 = vadd.f32 0.0, %v1141
        %1143 = vdwg.mxu0
        %1146 = vrot.lane.b32.xlu0 %v964, 64
        %v1147 = vpop.permute.xlu0 %1146
        %1148 = vrot.lane.b32.xlu0 %v968, 64
        %v1149 = vpop.permute.xlu0 %1148
        %v1152 = vld [vmem:[%s4] sm:$0xff]
        %v1153 = vld [vmem:[%s4 + $0x8] sm:$0xff]
        %v1154 = vld [vmem:[%s4 + $0x10] sm:$0xff]
        %v1155 = vld [vmem:[%s4 + $0x18] sm:$0xff]
        %v1156 = vld [vmem:[%s4 + $0x20] sm:$0xff]
        %v1157 = vld [vmem:[%s4 + $0x28] sm:$0xff]
        %v1158 = vmul.f32 %v964, %v1152
        %v1159 = vmul.f32 %v968, %v1153
        %v1160 = vmul.f32 %v1147, %v1154
        %v1161 = vmul.f32 %v1149, %v1155
        %v1162 = vmul.f32 %v966, %v1156
        %v1163 = vmul.f32 %v970, %v1157
        %1166 = vrot.lane.b32.xlu0 %v964, 96
        %v1167 = vpop.permute.xlu0 %1166
        %1168 = vrot.lane.b32.xlu0 %v968, 96
        %v1169 = vpop.permute.xlu0 %1168
        %1170 = vrot.lane.b32.xlu0 %v1147, 96
        %v1171 = vpop.permute.xlu0 %1170
        %1172 = vrot.lane.b32.xlu0 %v1149, 96
        %v1173 = vpop.permute.xlu0 %1172
        %1174 = vrot.lane.b32.xlu0 %v966, 96
        %v1175 = vpop.permute.xlu0 %1174
        %1176 = vrot.lane.b32.xlu0 %v970, 96
        %v1177 = vpop.permute.xlu0 %1176
        %1184 = vrot.lane.b32.xlu0 %v964, 32
        %v1185 = vpop.permute.xlu0 %1184
        %1186 = vrot.lane.b32.xlu0 %v968, 32
        %v1187 = vpop.permute.xlu0 %1186
        %1188 = vrot.lane.b32.xlu0 %v1147, 32
        %v1189 = vpop.permute.xlu0 %1188
        %1190 = vrot.lane.b32.xlu0 %v1149, 32
        %v1191 = vpop.permute.xlu0 %1190
        %1192 = vrot.lane.b32.xlu0 %v966, 32
        %v1193 = vpop.permute.xlu0 %1192
        %1194 = vrot.lane.b32.xlu0 %v970, 32
        %v1195 = vpop.permute.xlu0 %1194
        %vm1202 = vcmask 261120
        %v1203 = vsel %vm1202, %v1167, %v1185
        %v1204 = vsel %vm1202, %v1169, %v1187
        %v1205 = vsel %vm1202, %v1171, %v1189
        %v1206 = vsel %vm1202, %v1173, %v1191
        %v1207 = vsel %vm1202, %v1175, %v1193
        %v1208 = vsel %vm1202, %v1177, %v1195
        %1215 = vrot.lane.b32.xlu0 %v1152, 64
        %v1216 = vpop.permute.xlu0 %1215
        %1217 = vrot.lane.b32.xlu0 %v1153, 64
        %v1218 = vpop.permute.xlu0 %1217
        %1219 = vrot.lane.b32.xlu0 %v1154, 64
        %v1220 = vpop.permute.xlu0 %1219
        %1221 = vrot.lane.b32.xlu0 %v1155, 64
        %v1222 = vpop.permute.xlu0 %1221
        %1223 = vrot.lane.b32.xlu0 %v1156, 64
        %v1224 = vpop.permute.xlu0 %1223
        %1225 = vrot.lane.b32.xlu0 %v1157, 64
        %v1226 = vpop.permute.xlu0 %1225
        %v1233 = vmul.f32 %v1203, %v1216
        %v1234 = vmul.f32 %v1204, %v1218
        %v1235 = vmul.f32 %v1205, %v1220
        %v1236 = vmul.f32 %v1206, %v1222
        %v1237 = vmul.f32 %v1207, %v1224
        %v1238 = vmul.f32 %v1208, %v1226
        %v1239 = vadd.f32 %v1158, %v1233
        %v1240 = vadd.f32 %v1159, %v1234
        %v1241 = vadd.f32 %v1160, %v1235
        %v1242 = vadd.f32 %v1161, %v1236
        %v1243 = vadd.f32 %v1162, %v1237
        %v1244 = vadd.f32 %v1163, %v1238
        %v1245 = vpack.c.bf16 %v1240, %v1239
        %v1246 = vpack.c.bf16 %v1242, %v1241
        %v1247 = vpack.c.bf16 %v1244, %v1243
        %v1248 = vld [vmem:[%s5] sm:$0xff]
        %v1249 = vld [vmem:[%s5 + $0x8] sm:$0xff]
        %v1250 = vld [vmem:[%s5 + $0x10] sm:$0xff]
        %v1251 = vld [vmem:[%s5 + $0x18] sm:$0xff]
        %vm1252 = vcmask 523264
        %v1254 = vsel %vm1252, %v1245, 0
        %v1257 = vsel %vm1252, %v1246, 0
        %v1260 = vsel %vm1252, %v1247, 0
        %1262 = vmatprep.subr.bf16.mxu0 0
        %1263 = vmatpush1.bf16.xpose.msra.mxu0 %v1260
        %1264 = vmatprep.subr.bf16.mxu0 0
        %1265 = vmatpush1.bf16.xpose.msra.mxu0 0
        %1266 = vmatprep.subr.bf16.mxu0 0
        %1267 = vmatpush1.bf16.xpose.msra.mxu0 0
        %1268 = vmatprep.subr.bf16.mxu0 0
        %1269 = vmatpush1.bf16.xpose.msra.mxu0 0
        %1270 = vmatprep.subr.bf16.mxu0 0
        %1271 = vmatpush1.bf16.xpose.msra.mxu0 0
        %1272 = vmatprep.subr.bf16.mxu0 0
        %1273 = vmatpush1.bf16.xpose.msra.mxu0 0
        %1274 = vmatprep.subr.bf16.mxu0 0
        %1275 = vmatpush1.bf16.xpose.msra.mxu0 0
        %1276 = vmatprep.subr.bf16.mxu0 0
        %1277 = vmatpush1.bf16.xpose.msra.mxu0 0
        %1278 = vmatprep.subr.bf16.mxu0 0
        %1279 = vmatpush1.bf16.xpose.msra.mxu0 0
        %1280 = vmatprep.subr.bf16.mxu0 0
        %1281 = vmatpush1.bf16.xpose.msra.mxu0 0
        %1282 = vmatprep.subr.bf16.mxu0 0
        %1283 = vmatpush1.bf16.xpose.msra.mxu0 0
        %1284 = vmatprep.subr.bf16.mxu0 0
        %1285 = vmatpush1.bf16.xpose.msra.mxu0 0
        %1286 = vmatprep.subr.bf16.mxu0 0
        %1287 = vmatpush1.bf16.xpose.msra.mxu0 0
        %1288 = vmatprep.subr.bf16.mxu0 0
        %1289 = vmatpush1.bf16.xpose.msra.mxu0 0
        %1290 = vmatprep.subr.bf16.mxu0 0
        %1291 = vmatpush1.bf16.xpose.msra.mxu0 0
        %1292 = vmatprep.subr.bf16.mxu0 0
        %1293 = vmatpush1.bf16.xpose.msra.mxu0 0
        %1294 = vmatprep.mubr.bf16.mxu0 0
        %1295 = vmatmul.mubr.bf16.gmra.mrb[0].mxu0 %v1254
        %v1296 = vpop.f32.mrb[0].mxu0
        %v1297 = vadd.f32 %v1248, %v1296
        %v1298 = vpop.f32.mrb[0].mxu0
        %v1299 = vpop.f32.mrb[0].mxu0
        %v1300 = vadd.f32 %v1249, %v1299
        %v1301 = vpop.f32.mrb[0].mxu0
        %1302 = vmatprep.mubr.bf16.mxu0 0
        %1303 = vmatmul.mubr.bf16.gmra.mrb[0].mxu0 %v1257
        %v1304 = vpop.f32.mrb[0].mxu0
        %v1305 = vadd.f32 %v1250, %v1304
        %v1306 = vpop.f32.mrb[0].mxu0
        %v1307 = vpop.f32.mrb[0].mxu0
        %v1308 = vadd.f32 %v1251, %v1307
        %v1309 = vpop.f32.mrb[0].mxu0
        %1310 = vdwg.mxu0
        %vm1311 = vcmask 130048
        %v1312 = vsel %vm1311, %v1297, -inf
        %1313 = vmax.xlane.f32.xlu0 %v1312
        %v1314 = vpop.xlane.xlu0 %1313
        %v1315 = vsel %vm1311, %v1300, -inf
        %1316 = vmax.xlane.f32.xlu0 %v1315
        %v1317 = vpop.xlane.xlu0 %1316
        %v1318 = vsel %vm1311, %v1305, -inf
        %1319 = vmax.xlane.f32.xlu0 %v1318
        %v1320 = vpop.xlane.xlu0 %1319
        %v1321 = vsel %vm1311, %v1308, -inf
        %1322 = vmax.xlane.f32.xlu0 %v1321
        %v1323 = vpop.xlane.xlu0 %1322
        %v1324 = vsub.f32 %v1297, %v1314
        %v1325 = vsub.f32 %v1300, %v1317
        %v1326 = vsub.f32 %v1305, %v1320
        %v1327 = vsub.f32 %v1308, %v1323
        %v1328 = vmul.f32 %v1324, 1.442695
        %v1329 = vpow.pop %v1328
        %v1330 = vmul.f32 %v1325, 1.442695
        %v1331 = vpow.pop %v1330
        %v1332 = vmul.f32 %v1326, 1.442695
        %v1333 = vpow.pop %v1332
        %v1334 = vmul.f32 %v1327, 1.442695
        %v1335 = vpow.pop %v1334
        %v1336 = vsel %vm1311, %v1329, 0.0
        %1337 = vadd.xlane.f32.xlu0 %v1336
        %v1338 = vpop.xlane.xlu0 %1337
        %v1339 = vsel %vm1311, %v1331, 0.0
        %1340 = vadd.xlane.f32.xlu0 %v1339
        %v1341 = vpop.xlane.xlu0 %1340
        %v1342 = vsel %vm1311, %v1333, 0.0
        %1343 = vadd.xlane.f32.xlu0 %v1342
        %v1344 = vpop.xlane.xlu0 %1343
        %v1345 = vsel %vm1311, %v1335, 0.0
        %1346 = vadd.xlane.f32.xlu0 %v1345
        %v1347 = vpop.xlane.xlu0 %1346
        %v1348 = vrcp.pop %v1338
        %v1349 = vrcp.pop %v1341
        %v1350 = vrcp.pop %v1344
        %v1351 = vrcp.pop %v1347
        %v1352 = vmul.f32 %v1329, %v1348
        %v1353 = vmul.f32 %v1331, %v1349
        %v1354 = vmul.f32 %v1333, %v1350
        %v1355 = vmul.f32 %v1335, %v1351
        %v1356 = vpack.c.bf16 %v1353, %v1352
        %v1357 = vpack.c.bf16 %v1355, %v1354
        %v1358 = vpack.c.bf16 %v970, %v966
        %1360 = vrot.lane.b32.xlu0 %v1358, 64
        %v1361 = vpop.permute.xlu0 %1360
        %v1364 = vsel %vm1311, %v1356, 0
        %v1367 = vsel %vm1311, %v1357, 0
        %1369 = vmatprep.subr.bf16.mxu0 0
        %1370 = vmatpush1.bf16.msra.mxu0 %v1361
        %1371 = vmatprep.subr.bf16.mxu0 0
        %1372 = vmatpush1.bf16.msra.mxu0 0
        %1373 = vmatprep.subr.bf16.mxu0 0
        %1374 = vmatpush1.bf16.msra.mxu0 0
        %1375 = vmatprep.subr.bf16.mxu0 0
        %1376 = vmatpush1.bf16.msra.mxu0 0
        %1377 = vmatprep.subr.bf16.mxu0 0
        %1378 = vmatpush1.bf16.msra.mxu0 0
        %1379 = vmatprep.subr.bf16.mxu0 0
        %1380 = vmatpush1.bf16.msra.mxu0 0
        %1381 = vmatprep.subr.bf16.mxu0 0
        %1382 = vmatpush1.bf16.msra.mxu0 0
        %1383 = vmatprep.subr.bf16.mxu0 0
        %1384 = vmatpush1.bf16.msra.mxu0 0
        %1385 = vmatprep.subr.bf16.mxu0 0
        %1386 = vmatpush1.bf16.msra.mxu0 0
        %1387 = vmatprep.subr.bf16.mxu0 0
        %1388 = vmatpush1.bf16.msra.mxu0 0
        %1389 = vmatprep.subr.bf16.mxu0 0
        %1390 = vmatpush1.bf16.msra.mxu0 0
        %1391 = vmatprep.subr.bf16.mxu0 0
        %1392 = vmatpush1.bf16.msra.mxu0 0
        %1393 = vmatprep.subr.bf16.mxu0 0
        %1394 = vmatpush1.bf16.msra.mxu0 0
        %1395 = vmatprep.subr.bf16.mxu0 0
        %1396 = vmatpush1.bf16.msra.mxu0 0
        %1397 = vmatprep.subr.bf16.mxu0 0
        %1398 = vmatpush1.bf16.msra.mxu0 0
        %1399 = vmatprep.subr.bf16.mxu0 0
        %1400 = vmatpush1.bf16.msra.mxu0 0
        %1401 = vmatprep.mubr.bf16.mxu0 0
        %1402 = vmatmul.mubr.bf16.gmra.mrb[0].mxu0 %v1364
        %v1403 = vpop.f32.mrb[0].mxu0
        %v1404 = vadd.f32 0.0, %v1403
        %v1405 = vpop.f32.mrb[0].mxu0
        %v1406 = vpop.f32.mrb[0].mxu0
        %v1407 = vadd.f32 0.0, %v1406
        %v1408 = vpop.f32.mrb[0].mxu0
        %1409 = vmatprep.mubr.bf16.mxu0 0
        %1410 = vmatmul.mubr.bf16.gmra.mrb[0].mxu0 %v1367
        %v1411 = vpop.f32.mrb[0].mxu0
        %v1412 = vadd.f32 0.0, %v1411
        %v1413 = vpop.f32.mrb[0].mxu0
        %v1414 = vpop.f32.mrb[0].mxu0
        %v1415 = vadd.f32 0.0, %v1414
        %v1416 = vpop.f32.mrb[0].mxu0
        %1417 = vdwg.mxu0
        %1420 = vrot.lane.b32.xlu0 %v1412, 64
        %v1421 = vpop.permute.xlu0 %1420
        %1422 = vrot.lane.b32.xlu0 %v1415, 64
        %v1423 = vpop.permute.xlu0 %1422
        %v1426 = vsel %vm1252, %v1404, %v1421
        %v1427 = vsel %vm1252, %v1407, %v1423
        %v1428 = vmul.f32 %v1007, %v1093
        %v1429 = vmul.f32 %v1009, %v1095
        %v1430 = vmul.f32 %v1050, %v1136
        %v1431 = vmul.f32 %v1052, %v1138
        %v1432 = vmul.f32 %v1011, %v1097
        %v1433 = vmul.f32 %v1013, %v1099
        %v1434 = vmul.f32 %v1054, %v1140
        %v1435 = vmul.f32 %v1056, %v1142
        %v1436 = vxor.u32 %v1093, 2147483648
        %v1437 = vxor.u32 %v1095, 2147483648
        %v1438 = vxor.u32 %v1136, 2147483648
        %v1439 = vxor.u32 %v1138, 2147483648
        %v1440 = vxor.u32 %v1097, 2147483648
        %v1441 = vxor.u32 %v1099, 2147483648
        %v1442 = vxor.u32 %v1140, 2147483648
        %v1443 = vxor.u32 %v1142, 2147483648
        %v1444 = vmul.f32 %v1436, 1.442695
        %v1445 = vpow.pop %v1444
        %v1446 = vmul.f32 %v1437, 1.442695
        %v1447 = vpow.pop %v1446
        %v1448 = vmul.f32 %v1438, 1.442695
        %v1449 = vpow.pop %v1448
        %v1450 = vmul.f32 %v1439, 1.442695
        %v1451 = vpow.pop %v1450
        %v1452 = vmul.f32 %v1440, 1.442695
        %v1453 = vpow.pop %v1452
        %v1454 = vmul.f32 %v1441, 1.442695
        %v1455 = vpow.pop %v1454
        %v1456 = vmul.f32 %v1442, 1.442695
        %v1457 = vpow.pop %v1456
        %v1458 = vmul.f32 %v1443, 1.442695
        %v1459 = vpow.pop %v1458
        %v1460 = vadd.f32 %v1445, 1.0
        %v1461 = vadd.f32 %v1447, 1.0
        %v1462 = vadd.f32 %v1449, 1.0
        %v1463 = vadd.f32 %v1451, 1.0
        %v1464 = vadd.f32 %v1453, 1.0
        %v1465 = vadd.f32 %v1455, 1.0
        %v1466 = vadd.f32 %v1457, 1.0
        %v1467 = vadd.f32 %v1459, 1.0
        %v1468 = vrcp.pop %v1460
        %v1469 = vmul.f32 1.0, %v1468
        %v1470 = vrcp.pop %v1461
        %v1471 = vmul.f32 1.0, %v1470
        %v1472 = vrcp.pop %v1462
        %v1473 = vmul.f32 1.0, %v1472
        %v1474 = vrcp.pop %v1463
        %v1475 = vmul.f32 1.0, %v1474
        %v1476 = vrcp.pop %v1464
        %v1477 = vmul.f32 1.0, %v1476
        %v1478 = vrcp.pop %v1465
        %v1479 = vmul.f32 1.0, %v1478
        %v1480 = vrcp.pop %v1466
        %v1481 = vmul.f32 1.0, %v1480
        %v1482 = vrcp.pop %v1467
        %v1483 = vmul.f32 1.0, %v1482
        %v1484 = vmul.f32 %v1428, %v1469
        %v1485 = vmul.f32 %v1429, %v1471
        %v1486 = vmul.f32 %v1430, %v1473
        %v1487 = vmul.f32 %v1431, %v1475
        %v1488 = vmul.f32 %v1432, %v1477
        %v1489 = vmul.f32 %v1433, %v1479
        %v1490 = vmul.f32 %v1434, %v1481
        %v1491 = vmul.f32 %v1435, %v1483
        %v1492 = vpack.c.bf16 %v1427, %v1426
        %v1493 = vpack.c.bf16 %v1488, %v1484
        %v1494 = vpack.c.bf16 %v1489, %v1485
        %v1495 = vpack.c.bf16 %v1490, %v1486
        %v1496 = vpack.c.bf16 %v1491, %v1487
        %v1497 = vld [vmem:[%s364] sm:$0xf]
        %v1498 = vld [vmem:[%s364 + $0x4] sm:$0xf]
        %v1499 = vld [vmem:[%s364 + $0x8] sm:$0xf]
        %v1500 = vld [vmem:[%s364 + $0xc] sm:$0xf]
        %v1501 = vld [vmem:[%s364 + $0x10] sm:$0xf]
        %v1502 = vld [vmem:[%s364 + $0x14] sm:$0xf]
        %v1503 = vld [vmem:[%s364 + $0x18] sm:$0xf]
        %v1504 = vld [vmem:[%s364 + $0x1c] sm:$0xf]
        %v1505 = vld [vmem:[%s364 + $0x20] sm:$0xf]
        %v1506 = vld [vmem:[%s364 + $0x24] sm:$0xf]
        %v1507 = vld [vmem:[%s364 + $0x28] sm:$0xf]
        %v1508 = vld [vmem:[%s364 + $0x2c] sm:$0xf]
        %v1509 = vld [vmem:[%s364 + $0x30] sm:$0xf]
        %v1510 = vld [vmem:[%s364 + $0x34] sm:$0xf]
        %v1511 = vld [vmem:[%s364 + $0x38] sm:$0xf]
        %v1512 = vld [vmem:[%s364 + $0x3c] sm:$0xf]
        %v1513 = vld [vmem:[%s364 + $0x40] sm:$0xf]
        %v1514 = vld [vmem:[%s364 + $0x44] sm:$0xf]
        %v1515 = vld [vmem:[%s364 + $0x48] sm:$0xf]
        %v1516 = vld [vmem:[%s364 + $0x4c] sm:$0xf]
        %v1517 = vld [vmem:[%s364 + $0x50] sm:$0xf]
        %v1518 = vld [vmem:[%s364 + $0x54] sm:$0xf]
        %v1519 = vld [vmem:[%s364 + $0x58] sm:$0xf]
        %v1520 = vld [vmem:[%s364 + $0x5c] sm:$0xf]
        %v1521 = vld [vmem:[%s364 + $0x60] sm:$0xf]
        %v1522 = vld [vmem:[%s364 + $0x64] sm:$0xf]
        %v1523 = vld [vmem:[%s364 + $0x68] sm:$0xf]
        %v1524 = vld [vmem:[%s364 + $0x6c] sm:$0xf]
        %v1525 = vld [vmem:[%s364 + $0x70] sm:$0xf]
        %v1526 = vld [vmem:[%s364 + $0x74] sm:$0xf]
        %v1527 = vld [vmem:[%s364 + $0x78] sm:$0xf]
        %v1528 = vld [vmem:[%s364 + $0x7c] sm:$0xf]
        %v1529 = vld [vmem:[%s364 + $0x80] sm:$0xf]
        %v1530 = vld [vmem:[%s364 + $0x84] sm:$0xf]
        %v1531 = vld [vmem:[%s364 + $0x88] sm:$0xf]
        %v1532 = vld [vmem:[%s364 + $0x8c] sm:$0xf]
        %v1533 = vld [vmem:[%s364 + $0x90] sm:$0xf]
        %v1534 = vld [vmem:[%s364 + $0x94] sm:$0xf]
        %v1535 = vld [vmem:[%s364 + $0x98] sm:$0xf]
        %v1536 = vld [vmem:[%s364 + $0x9c] sm:$0xf]
        %v1537 = vld [vmem:[%s364 + $0xa0] sm:$0xf]
        %v1538 = vld [vmem:[%s364 + $0xa4] sm:$0xf]
        %v1539 = vld [vmem:[%s364 + $0xa8] sm:$0xf]
        %v1540 = vld [vmem:[%s364 + $0xac] sm:$0xf]
        %v1541 = vld [vmem:[%s364 + $0xb0] sm:$0xf]
        %v1542 = vld [vmem:[%s364 + $0xb4] sm:$0xf]
        %v1543 = vld [vmem:[%s364 + $0xb8] sm:$0xf]
        %v1544 = vld [vmem:[%s364 + $0xbc] sm:$0xf]
        %v1545 = vld [vmem:[%s364 + $0xc0] sm:$0xf]
        %v1546 = vld [vmem:[%s364 + $0xc4] sm:$0xf]
        %v1547 = vld [vmem:[%s364 + $0xc8] sm:$0xf]
        %v1548 = vld [vmem:[%s364 + $0xcc] sm:$0xf]
        %v1549 = vld [vmem:[%s364 + $0xd0] sm:$0xf]
        %v1550 = vld [vmem:[%s364 + $0xd4] sm:$0xf]
        %v1551 = vld [vmem:[%s364 + $0xd8] sm:$0xf]
        %v1552 = vld [vmem:[%s364 + $0xdc] sm:$0xf]
        %v1553 = vld [vmem:[%s364 + $0xe0] sm:$0xf]
        %v1554 = vld [vmem:[%s364 + $0xe4] sm:$0xf]
        %v1555 = vld [vmem:[%s364 + $0xe8] sm:$0xf]
        %v1556 = vld [vmem:[%s364 + $0xec] sm:$0xf]
        %v1557 = vld [vmem:[%s364 + $0xf0] sm:$0xf]
        %v1558 = vld [vmem:[%s364 + $0xf4] sm:$0xf]
        %v1559 = vld [vmem:[%s364 + $0xf8] sm:$0xf]
        %v1560 = vld [vmem:[%s364 + $0xfc] sm:$0xf]
        %v1561 = vld [vmem:[%s364 + $0x100] sm:$0xf]
        %v1562 = vld [vmem:[%s364 + $0x104] sm:$0xf]
        %v1563 = vld [vmem:[%s364 + $0x108] sm:$0xf]
        %v1564 = vld [vmem:[%s364 + $0x10c] sm:$0xf]
        %v1565 = vld [vmem:[%s364 + $0x110] sm:$0xf]
        %v1566 = vld [vmem:[%s364 + $0x114] sm:$0xf]
        %v1567 = vld [vmem:[%s364 + $0x118] sm:$0xf]
        %v1568 = vld [vmem:[%s364 + $0x11c] sm:$0xf]
        %v1569 = vld [vmem:[%s364 + $0x120] sm:$0xf]
        %v1570 = vld [vmem:[%s364 + $0x124] sm:$0xf]
        %v1571 = vld [vmem:[%s364 + $0x128] sm:$0xf]
        %v1572 = vld [vmem:[%s364 + $0x12c] sm:$0xf]
        %v1573 = vld [vmem:[%s364 + $0x130] sm:$0xf]
        %v1574 = vld [vmem:[%s364 + $0x134] sm:$0xf]
        %v1575 = vld [vmem:[%s364 + $0x138] sm:$0xf]
        %v1576 = vld [vmem:[%s364 + $0x13c] sm:$0xf]
        %v1657 = vunpack.c.l.b16 %v1497
        %v1658 = vunpack.c.l.b16 %v1498
        %v1659 = vunpack.c.l.b16 %v1499
        %v1660 = vunpack.c.l.b16 %v1500
        %v1661 = vunpack.c.l.b16 %v1501
        %v1662 = vunpack.c.l.b16 %v1502
        %v1663 = vunpack.c.l.b16 %v1503
        %v1664 = vunpack.c.l.b16 %v1504
        %v1665 = vunpack.c.l.b16 %v1505
        %v1666 = vunpack.c.l.b16 %v1506
        %v1667 = vunpack.c.l.b16 %v1507
        %v1668 = vunpack.c.l.b16 %v1508
        %v1669 = vunpack.c.l.b16 %v1509
        %v1670 = vunpack.c.l.b16 %v1510
        %v1671 = vunpack.c.l.b16 %v1511
        %v1672 = vunpack.c.l.b16 %v1512
        %v1673 = vunpack.c.l.b16 %v1513
        %v1674 = vunpack.c.l.b16 %v1514
        %v1675 = vunpack.c.l.b16 %v1515
        %v1676 = vunpack.c.l.b16 %v1516
        %v1677 = vunpack.c.l.b16 %v1517
        %v1678 = vunpack.c.l.b16 %v1518
        %v1679 = vunpack.c.l.b16 %v1519
        %v1680 = vunpack.c.l.b16 %v1520
        %v1681 = vunpack.c.l.b16 %v1521
        %v1682 = vunpack.c.l.b16 %v1522
        %v1683 = vunpack.c.l.b16 %v1523
        %v1684 = vunpack.c.l.b16 %v1524
        %v1685 = vunpack.c.l.b16 %v1525
        %v1686 = vunpack.c.l.b16 %v1526
        %v1687 = vunpack.c.l.b16 %v1527
        %v1688 = vunpack.c.l.b16 %v1528
        %v1689 = vunpack.c.l.b16 %v1529
        %v1690 = vunpack.c.l.b16 %v1530
        %v1691 = vunpack.c.l.b16 %v1531
        %v1692 = vunpack.c.l.b16 %v1532
        %v1693 = vunpack.c.l.b16 %v1533
        %v1694 = vunpack.c.l.b16 %v1534
        %v1695 = vunpack.c.l.b16 %v1535
        %v1696 = vunpack.c.l.b16 %v1536
        %v1697 = vunpack.c.l.b16 %v1537
        %v1698 = vunpack.c.l.b16 %v1538
        %v1699 = vunpack.c.l.b16 %v1539
        %v1700 = vunpack.c.l.b16 %v1540
        %v1701 = vunpack.c.l.b16 %v1541
        %v1702 = vunpack.c.l.b16 %v1542
        %v1703 = vunpack.c.l.b16 %v1543
        %v1704 = vunpack.c.l.b16 %v1544
        %v1705 = vunpack.c.l.b16 %v1545
        %v1706 = vunpack.c.l.b16 %v1546
        %v1707 = vunpack.c.l.b16 %v1547
        %v1708 = vunpack.c.l.b16 %v1548
        %v1709 = vunpack.c.l.b16 %v1549
        %v1710 = vunpack.c.l.b16 %v1550
        %v1711 = vunpack.c.l.b16 %v1551
        %v1712 = vunpack.c.l.b16 %v1552
        %v1713 = vunpack.c.l.b16 %v1553
        %v1714 = vunpack.c.l.b16 %v1554
        %v1715 = vunpack.c.l.b16 %v1555
        %v1716 = vunpack.c.l.b16 %v1556
        %v1717 = vunpack.c.l.b16 %v1557
        %v1718 = vunpack.c.l.b16 %v1558
        %v1719 = vunpack.c.l.b16 %v1559
        %v1720 = vunpack.c.l.b16 %v1560
        %v1721 = vunpack.c.l.b16 %v1561
        %v1722 = vunpack.c.l.b16 %v1562
        %v1723 = vunpack.c.l.b16 %v1563
        %v1724 = vunpack.c.l.b16 %v1564
        %v1725 = vunpack.c.l.b16 %v1565
        %v1726 = vunpack.c.l.b16 %v1566
        %v1727 = vunpack.c.l.b16 %v1567
        %v1728 = vunpack.c.l.b16 %v1568
        %v1729 = vunpack.c.l.b16 %v1569
        %v1730 = vunpack.c.l.b16 %v1570
        %v1731 = vunpack.c.l.b16 %v1571
        %v1732 = vunpack.c.l.b16 %v1572
        %v1733 = vunpack.c.l.b16 %v1573
        %v1734 = vunpack.c.l.b16 %v1574
        %v1735 = vunpack.c.l.b16 %v1575
        %v1736 = vunpack.c.l.b16 %v1576
        %v1737 = vpack.c.b16 %v1658, %v1657
        %v1738 = vpack.c.b16 %v1660, %v1659
        %v1739 = vpack.c.b16 %v1662, %v1661
        %v1740 = vpack.c.b16 %v1664, %v1663
        %v1741 = vpack.c.b16 %v1666, %v1665
        %v1742 = vpack.c.b16 %v1668, %v1667
        %v1743 = vpack.c.b16 %v1670, %v1669
        %v1744 = vpack.c.b16 %v1672, %v1671
        %v1745 = vpack.c.b16 %v1674, %v1673
        %v1746 = vpack.c.b16 %v1676, %v1675
        %v1747 = vpack.c.b16 %v1678, %v1677
        %v1748 = vpack.c.b16 %v1680, %v1679
        %v1749 = vpack.c.b16 %v1682, %v1681
        %v1750 = vpack.c.b16 %v1684, %v1683
        %v1751 = vpack.c.b16 %v1686, %v1685
        %v1752 = vpack.c.b16 %v1688, %v1687
        %v1753 = vpack.c.b16 %v1690, %v1689
        %v1754 = vpack.c.b16 %v1692, %v1691
        %v1755 = vpack.c.b16 %v1694, %v1693
        %v1756 = vpack.c.b16 %v1696, %v1695
        %v1757 = vpack.c.b16 %v1698, %v1697
        %v1758 = vpack.c.b16 %v1700, %v1699
        %v1759 = vpack.c.b16 %v1702, %v1701
        %v1760 = vpack.c.b16 %v1704, %v1703
        %v1761 = vpack.c.b16 %v1706, %v1705
        %v1762 = vpack.c.b16 %v1708, %v1707
        %v1763 = vpack.c.b16 %v1710, %v1709
        %v1764 = vpack.c.b16 %v1712, %v1711
        %v1765 = vpack.c.b16 %v1714, %v1713
        %v1766 = vpack.c.b16 %v1716, %v1715
        %v1767 = vpack.c.b16 %v1718, %v1717
        %v1768 = vpack.c.b16 %v1720, %v1719
        %v1769 = vpack.c.b16 %v1722, %v1721
        %v1770 = vpack.c.b16 %v1724, %v1723
        %v1771 = vpack.c.b16 %v1726, %v1725
        %v1772 = vpack.c.b16 %v1728, %v1727
        %v1773 = vpack.c.b16 %v1730, %v1729
        %v1774 = vpack.c.b16 %v1732, %v1731
        %v1775 = vpack.c.b16 %v1734, %v1733
        %v1776 = vpack.c.b16 %v1736, %v1735
        %1817 = vmatprep.subr.bf16.mxu0 0
        %1818 = vmatpush1.bf16.msra.mxu0 %v1737
        %1819 = vmatprep.subr.bf16.mxu0 0
        %1820 = vmatpush1.bf16.msra.mxu0 %v1738
        %1821 = vmatprep.subr.bf16.mxu0 0
        %1822 = vmatpush1.bf16.msra.mxu0 %v1739
        %1823 = vmatprep.subr.bf16.mxu0 0
        %1824 = vmatpush1.bf16.msra.mxu0 %v1740
        %1825 = vmatprep.subr.bf16.mxu0 0
        %1826 = vmatpush1.bf16.msra.mxu0 %v1741
        %1827 = vmatprep.subr.bf16.mxu0 0
        %1828 = vmatpush1.bf16.msra.mxu0 %v1742
        %1829 = vmatprep.subr.bf16.mxu0 0
        %1830 = vmatpush1.bf16.msra.mxu0 %v1743
        %1831 = vmatprep.subr.bf16.mxu0 0
        %1832 = vmatpush1.bf16.msra.mxu0 %v1744
        %1833 = vmatprep.subr.bf16.mxu0 0
        %1834 = vmatpush1.bf16.msra.mxu0 %v1745
        %1835 = vmatprep.subr.bf16.mxu0 0
        %1836 = vmatpush1.bf16.msra.mxu0 %v1746
        %1837 = vmatprep.subr.bf16.mxu0 0
        %1838 = vmatpush1.bf16.msra.mxu0 %v1747
        %1839 = vmatprep.subr.bf16.mxu0 0
        %1840 = vmatpush1.bf16.msra.mxu0 %v1748
        %1841 = vmatprep.subr.bf16.mxu0 0
        %1842 = vmatpush1.bf16.msra.mxu0 %v1749
        %1843 = vmatprep.subr.bf16.mxu0 0
        %1844 = vmatpush1.bf16.msra.mxu0 %v1750
        %1845 = vmatprep.subr.bf16.mxu0 0
        %1846 = vmatpush1.bf16.msra.mxu0 %v1751
        %1847 = vmatprep.subr.bf16.mxu0 0
        %1848 = vmatpush1.bf16.msra.mxu0 %v1752
        %1849 = vmatprep.mubr.bf16.mxu0 %v1493
        %1850 = vmatmul.mubr.bf16.gmra.mrb[0].mxu0 %v1492
        %v1851 = vpop.f32.mrb[0].mxu0
        %v1852 = vadd.f32 %v414, %v1851
        %v1853 = vpop.f32.mrb[0].mxu0
        %v1854 = vpop.f32.mrb[0].mxu0
        %v1855 = vadd.f32 %v415, %v1854
        %v1856 = vpop.f32.mrb[0].mxu0
        %1857 = vdwg.mxu0
        %1858 = vmatprep.subr.bf16.mxu0 0
        %1859 = vmatpush1.bf16.msra.mxu0 %v1753
        %1860 = vmatprep.subr.bf16.mxu0 0
        %1861 = vmatpush1.bf16.msra.mxu0 %v1754
        %1862 = vmatprep.subr.bf16.mxu0 0
        %1863 = vmatpush1.bf16.msra.mxu0 %v1755
        %1864 = vmatprep.subr.bf16.mxu0 0
        %1865 = vmatpush1.bf16.msra.mxu0 %v1756
        %1866 = vmatprep.subr.bf16.mxu0 0
        %1867 = vmatpush1.bf16.msra.mxu0 %v1757
        %1868 = vmatprep.subr.bf16.mxu0 0
        %1869 = vmatpush1.bf16.msra.mxu0 %v1758
        %1870 = vmatprep.subr.bf16.mxu0 0
        %1871 = vmatpush1.bf16.msra.mxu0 %v1759
        %1872 = vmatprep.subr.bf16.mxu0 0
        %1873 = vmatpush1.bf16.msra.mxu0 %v1760
        %1874 = vmatprep.subr.bf16.mxu0 0
        %1875 = vmatpush1.bf16.msra.mxu0 %v1761
        %1876 = vmatprep.subr.bf16.mxu0 0
        %1877 = vmatpush1.bf16.msra.mxu0 %v1762
        %1878 = vmatprep.subr.bf16.mxu0 0
        %1879 = vmatpush1.bf16.msra.mxu0 %v1763
        %1880 = vmatprep.subr.bf16.mxu0 0
        %1881 = vmatpush1.bf16.msra.mxu0 %v1764
        %1882 = vmatprep.subr.bf16.mxu0 0
        %1883 = vmatpush1.bf16.msra.mxu0 %v1765
        %1884 = vmatprep.subr.bf16.mxu0 0
        %1885 = vmatpush1.bf16.msra.mxu0 %v1766
        %1886 = vmatprep.subr.bf16.mxu0 0
        %1887 = vmatpush1.bf16.msra.mxu0 %v1767
        %1888 = vmatprep.subr.bf16.mxu0 0
        %1889 = vmatpush1.bf16.msra.mxu0 %v1768
        %1890 = vmatprep.mubr.bf16.mxu0 %v1495
        %1891 = vmatmul.mubr.bf16.gmra.mrb[0].mxu0 %v1494
        %v1892 = vpop.f32.mrb[0].mxu0
        %v1893 = vadd.f32 %v1852, %v1892
        %v1894 = vpop.f32.mrb[0].mxu0
        %v1895 = vpop.f32.mrb[0].mxu0
        %v1896 = vadd.f32 %v1855, %v1895
        %v1897 = vpop.f32.mrb[0].mxu0
        %1898 = vdwg.mxu0
        %1899 = vmatprep.subr.bf16.mxu0 0
        %1900 = vmatpush1.bf16.msra.mxu0 %v1769
        %1901 = vmatprep.subr.bf16.mxu0 0
        %1902 = vmatpush1.bf16.msra.mxu0 %v1770
        %1903 = vmatprep.subr.bf16.mxu0 0
        %1904 = vmatpush1.bf16.msra.mxu0 %v1771
        %1905 = vmatprep.subr.bf16.mxu0 0
        %1906 = vmatpush1.bf16.msra.mxu0 %v1772
        %1907 = vmatprep.subr.bf16.mxu0 0
        %1908 = vmatpush1.bf16.msra.mxu0 %v1773
        %1909 = vmatprep.subr.bf16.mxu0 0
        %1910 = vmatpush1.bf16.msra.mxu0 %v1774
        %1911 = vmatprep.subr.bf16.mxu0 0
        %1912 = vmatpush1.bf16.msra.mxu0 %v1775
        %1913 = vmatprep.subr.bf16.mxu0 0
        %1914 = vmatpush1.bf16.msra.mxu0 %v1776
        %1915 = vmatprep.subr.bf16.mxu0 0
        %1916 = vmatpush1.bf16.msra.mxu0 0
        %1917 = vmatprep.subr.bf16.mxu0 0
        %1918 = vmatpush1.bf16.msra.mxu0 0
        %1919 = vmatprep.subr.bf16.mxu0 0
        %1920 = vmatpush1.bf16.msra.mxu0 0
        %1921 = vmatprep.subr.bf16.mxu0 0
        %1922 = vmatpush1.bf16.msra.mxu0 0
        %1923 = vmatprep.subr.bf16.mxu0 0
        %1924 = vmatpush1.bf16.msra.mxu0 0
        %1925 = vmatprep.subr.bf16.mxu0 0
        %1926 = vmatpush1.bf16.msra.mxu0 0
        %1927 = vmatprep.subr.bf16.mxu0 0
        %1928 = vmatpush1.bf16.msra.mxu0 0
        %1929 = vmatprep.subr.bf16.mxu0 0
        %1930 = vmatpush1.bf16.msra.mxu0 0
        %1931 = vmatprep.mubr.bf16.mxu0 0
        %1932 = vmatmul.mubr.bf16.gmra.mrb[0].mxu0 %v1496
        %v1933 = vpop.f32.mrb[0].mxu0
        %v1934 = vadd.f32 %v1893, %v1933
        %v1935 = vpop.f32.mrb[0].mxu0
        %v1936 = vpop.f32.mrb[0].mxu0
        %v1937 = vadd.f32 %v1896, %v1936
        %v1938 = vpop.f32.mrb[0].mxu0
        %1939 = vdwg.mxu0
        %1940 = vst [vmem:[#allocation2] sm:$0xff] %v1934
        %1941 = vst [vmem:[#allocation2 + $0x8] sm:$0xff] %v1937
        %p1942 = scmp.eq.s32.totalorder %s25, 1
        // Predicated region
        $region73: #{tpu_custom_call.1} parent=55 // pred_check
          %p1943 = pneg %p1942
        $region74: #{tpu_custom_call.1} parent=55 // pred_check_branch
          %1945 = sbr.rel (%p1943) target = $region76
        $region75: #{tpu_custom_call.1} parent=55 // pred_region
          %1946 = vadd.xlane.f32.xlu0 %v1934
          %v1947 = vpop.xlane.xlu0 %1946
          %1948 = vadd.xlane.f32.xlu0 %v1937
          %v1949 = vpop.xlane.xlu0 %1948
          %v1950 = vmul.f32 %v1947, %v420
          %v1951 = vmul.f32 %v1949, %v420
          %v1952 = vsub.f32 %v1934, %v1950
          %v1953 = vsub.f32 %v1937, %v1951
          %v1954 = vmul.f32 %v1952, %v1952
          %v1955 = vmul.f32 %v1953, %v1953
          %1956 = vadd.xlane.f32.xlu0 %v1954
          %v1957 = vpop.xlane.xlu0 %1956
          %1958 = vadd.xlane.f32.xlu0 %v1955
          %v1959 = vpop.xlane.xlu0 %1958
          %v1960 = vmul.f32 %v1957, %v420
          %v1961 = vmul.f32 %v1959, %v420
          %v1962 = vadd.f32 %v1960, 1e-05
          %v1963 = vadd.f32 %v1961, 1e-05
          %v1964 = vrsqrt.pop %v1962
          %v1965 = vrsqrt.pop %v1963
          %v1966 = vmul.f32 %v1952, %v1964
          %v1967 = vmul.f32 %v1953, %v1965
          %v1968 = vld [vmem:[%s7] sm:$0x1]
          %v1970 = vlaneseq
          %v1971 = vshrl.u32 %v1970, 7
          %v1972 = vsub.s32 0, %v1971
          %v1973 = vrot.slane %v1968, %v1972
          %v1975 = vmul.f32 %v1966, %v1973
          %v1976 = vmul.f32 %v1967, %v1973
          %v1977 = vld [vmem:[%s6] sm:$0x3]
          %v1979 = vsel %vm1311, %v1977, 0
          %1981 = vmatprep.subr.mxu0 0.0
          %1982 = vmatpush1.msra.mxu0 %v1975
          %1983 = vmatprep.subr.mxu0 0.0
          %1984 = vmatpush1.msra.mxu0 %v1976
          %1985 = vmatprep.subr.mxu0 0.0
          %1986 = vmatpush1.msra.mxu0 0.0
          %1987 = vmatprep.subr.mxu0 0.0
          %1988 = vmatpush1.msra.mxu0 0.0
          %1989 = vmatprep.subr.mxu0 0.0
          %1990 = vmatpush1.msra.mxu0 0.0
          %1991 = vmatprep.subr.mxu0 0.0
          %1992 = vmatpush1.msra.mxu0 0.0
          %1993 = vmatprep.subr.mxu0 0.0
          %1994 = vmatpush1.msra.mxu0 0.0
          %1995 = vmatprep.subr.mxu0 0.0
          %1996 = vmatpush1.msra.mxu0 0.0
          %1997 = vmatprep.subr.mxu0 0.0
          %1998 = vmatpush1.msra.mxu0 0.0
          %1999 = vmatprep.subr.mxu0 0.0
          %2000 = vmatpush1.msra.mxu0 0.0
          %2001 = vmatprep.subr.mxu0 0.0
          %2002 = vmatpush1.msra.mxu0 0.0
          %2003 = vmatprep.subr.mxu0 0.0
          %2004 = vmatpush1.msra.mxu0 0.0
          %2005 = vmatprep.subr.mxu0 0.0
          %2006 = vmatpush1.msra.mxu0 0.0
          %2007 = vmatprep.subr.mxu0 0.0
          %2008 = vmatpush1.msra.mxu0 0.0
          %2009 = vmatprep.subr.mxu0 0.0
          %2010 = vmatpush1.msra.mxu0 0.0
          %2011 = vmatprep.subr.mxu0 0.0
          %2012 = vmatpush1.msra.mxu0 0.0
          %2013 = vmatprep.subr.mxu0 0.0
          %2014 = vmatpush1.msra.mxu0 0.0
          %2015 = vmatprep.subr.mxu0 0.0
          %2016 = vmatpush1.msra.mxu0 0.0
          %2017 = vmatprep.subr.mxu0 0.0
          %2018 = vmatpush1.msra.mxu0 0.0
          %2019 = vmatprep.subr.mxu0 0.0
          %2020 = vmatpush1.msra.mxu0 0.0
          %2021 = vmatprep.subr.mxu0 0.0
          %2022 = vmatpush1.msra.mxu0 0.0
          %2023 = vmatprep.subr.mxu0 0.0
          %2024 = vmatpush1.msra.mxu0 0.0
          %2025 = vmatprep.subr.mxu0 0.0
          %2026 = vmatpush1.msra.mxu0 0.0
          %2027 = vmatprep.subr.mxu0 0.0
          %2028 = vmatpush1.msra.mxu0 0.0
          %2029 = vmatprep.subr.mxu0 0.0
          %2030 = vmatpush1.msra.mxu0 0.0
          %2031 = vmatprep.subr.mxu0 0.0
          %2032 = vmatpush1.msra.mxu0 0.0
          %2033 = vmatprep.subr.mxu0 0.0
          %2034 = vmatpush1.msra.mxu0 0.0
          %2035 = vmatprep.subr.mxu0 0.0
          %2036 = vmatpush1.msra.mxu0 0.0
          %2037 = vmatprep.subr.mxu0 0.0
          %2038 = vmatpush1.msra.mxu0 0.0
          %2039 = vmatprep.subr.mxu0 0.0
          %2040 = vmatpush1.msra.mxu0 0.0
          %2041 = vmatprep.subr.mxu0 0.0
          %2042 = vmatpush1.msra.mxu0 0.0
          %2043 = vmatprep.subr.mxu0 0.0
          %2044 = vmatpush1.msra.mxu0 0.0
          %2045 = vmatprep.mubr.f32.mxu0 0.0
          %2046 = vmatmul.mubr.f32.gmra.mrb[0].mxu0 %v1979
          %v2047 = vpop.f32.mrb[0].mxu0
          %v2048 = vadd.f32 0.0, %v2047
          %v2049 = vpop.f32.mrb[0].mxu0
          %2050 = vdwg.mxu0
          %v2051 = vld [vmem:[%s8] sm:$0x1]
          %v2053 = vlaneseq
          %v2054 = vshrl.u32 %v2053, 7
          %v2055 = vsub.s32 0, %v2054
          %v2056 = vrot.slane %v2051, %v2055
          %v2058 = vmul.f32 %v2048, %v2056
          %vm2059 = vcmask 1041408
          %v2060 = vsel %vm2059, %v2058, 0.0
          %2061 = vadd.xlane.f32.xlu0 %v2060
          %v2062 = vpop.xlane.xlu0 %2061
          %2063 = vst [vmem:[#allocation9] sm:$0x3] %v2062
        $region76: #{tpu_custom_call.1} parent=55 // pred_fallthru
          _
        // Predicated region
        $region77: #{tpu_custom_call.1} parent=55 // pred_check
          %p2064 = pneg %p242
        $region78: #{tpu_custom_call.1} parent=55 // pred_check_branch
          %2066 = sbr.rel (%p2064) target = $region80
        $region79: #{tpu_custom_call.1} parent=55 // pred_region
          %s2068 = ssub.s32 32, 32
          %2069 = vsyncadd [#allocation5], %s2068
          %s2071 = sshll.u32 [#allocation9], 4
          %s2072 = int_to_ptr.vmem [resolvable:$true] %s2071
          %2074 = dma.vmem_to_hbm [thread:$0]  %s2072, 32, %s9, [#allocation5]
        $region80: #{tpu_custom_call.1} parent=55 // pred_fallthru
          _
        // Predicated region
        $region81: #{tpu_custom_call.1} parent=55 // pred_check
          %p2075 = pneg %p242
        $region82: #{tpu_custom_call.1} parent=55 // pred_check_branch
          %2077 = sbr.rel (%p2075) target = $region84
        $region83: #{tpu_custom_call.1} parent=55 // pred_region
          %2078 = dma.done [#allocation5], 32
        $region84: #{tpu_custom_call.1} parent=55 // pred_fallthru
          _
      $region56: #{tpu_custom_call.1} parent=5 // pred_fallthru
        _
      %p2079 = scmp.le.s32.totalorder 2, %s20
      // Predicated region
      $region85: #{tpu_custom_call.1} parent=5 // pred_check
        %p2080 = pneg %p2079
      $region86: #{tpu_custom_call.1} parent=5 // pred_check_branch
        %2082 = sbr.rel (%p2080) target = $region88
      $region87: #{tpu_custom_call.1} parent=5 // pred_region
        %s2083 = ssub.s32 %s20, 2
      $region88: #{tpu_custom_call.1} parent=5 // pred_fallthru
        _
    $region6: #{tpu_custom_call.1} parent=1 // loop_footer
      %s24 = sadd.s32 1, %s20
    $region7: #{tpu_custom_call.1} parent=1 // loop_footer_branch
      %19 = sbr.rel target = $region3
    $region8: #{tpu_custom_call.1} parent=1 // loop_exit
      _
    %2084 = vsyncpa [#allocation4], 1
    %s2085 = scalar_lea.sflag [#allocation4], 1
    %2086 = vsyncpa %s2085, 1
    %2087 = vsyncpa [#allocation7], 1
    %s2088 = scalar_lea.sflag [#allocation7], 1
    %2089 = vsyncpa %s2088, 1
    %2090 = vsyncpa [#allocation5], 1
    %s2091 = scalar_lea.sflag [#allocation5], 1
    %2092 = vsyncpa %s2091, 1

</llo_original>
